<compile_context>
chip_gen: v6e
topology: v6e:2x2x1
jax: 0.10.0
libtpu: 0.0.40
codegen_flags: <defaults>
</compile_context>

<pallas_src>
import math
import functools

import numpy as np
import jax
import jax.numpy as jnp
from jax import lax
from jax.experimental import pallas as pl
from jax.experimental.pallas import tpu as pltpu


def _vmem_capacity_bytes():
    try:
        info = pltpu.get_tpu_info()
        cap = getattr(info, "vmem_capacity_bytes", None)
        if cap:
            return int(cap)
    except Exception:
        pass
    return 128 << 20


def _pick_q_chunk(seq_len, cap=512):
    """Largest q-row chunk <= cap dividing seq_len, preferring 256-, then 128-,
    then 8-multiples (MXU-friendly M dimension)."""
    if seq_len <= cap:
        return seq_len
    for step in (256, 128, 8):
        c = (cap // step) * step
        while c >= step:
            if seq_len % c == 0:
                return c
            c -= step
    # TODO(synk): pad awkward (prime-ish) T instead of reviving a full-T score tile.
    return seq_len


def _pick_head_group(n_head, hd, target=256, cap=512):
    """Heads per grid step: smallest divisor of n_head with G*hd >= target (and
    <= cap lanes); otherwise the largest divisor that stays within cap."""
    divs = [g for g in range(1, n_head + 1) if n_head % g == 0]
    for g in divs:
        if target <= g * hd <= cap:
            return g
    ok = [g for g in divs if g * hd <= cap]
    return max(ok) if ok else 1


def _attn_kernel(x_ref, wq_ref, wk_ref, wv_ref, bq_ref, bk_ref, bv_ref,
                 wp_ref, bp_ref, o_ref,
                 q_scr, k_scr, v_scr, y_scr, acc_scr, m_scr, l_scr, pacc_scr,
                 *, heads_per_group, head_dim, seq_len, q_chunk, n_groups,
                 compute_dtype, approx_recip, weights_resident):
    g = pl.program_id(1)
    widx = g if weights_resident else 0          # resident: index head-group in-kernel

    cdt = compute_dtype
    hd = head_dim
    tq = q_chunk
    n_chunks = seq_len // tq

    x = x_ref[0]                                  # (T, C), already compute dtype

    # ---- Group QKV projection: contraction over full C, N = G*hd (full MXU tile).
    q = jnp.dot(x, wq_ref[widx], preferred_element_type=jnp.float32) + bq_ref[widx]
    k = jnp.dot(x, wk_ref[widx], preferred_element_type=jnp.float32) + bk_ref[widx]
    v = jnp.dot(x, wv_ref[widx], preferred_element_type=jnp.float32) + bv_ref[widx]

    scale = 1.0 / math.sqrt(hd)
    q_scr[...] = q.astype(cdt)                    # stage in VMEM scratch (bounded vregs)
    k_scr[...] = (k * scale).astype(cdt)          # fold 1/sqrt(hd) into K once
    v_scr[...] = v.astype(cdt)

    # ---- Per-head flash-style attention with causal KV-tile skipping.
    for j in range(heads_per_group):              # static unroll over heads in group
        col = j * hd

        def q_chunk_body(c, carry, _col=col):
            r0 = pl.multiple_of(c * tq, tq)
            q_blk = q_scr[pl.ds(r0, tq), pl.ds(_col, hd)]          # (tq, hd)
            m_scr[...] = jnp.full(m_scr.shape, -jnp.inf, jnp.float32)
            l_scr[...] = jnp.zeros(l_scr.shape, jnp.float32)
            pacc_scr[...] = jnp.zeros(pacc_scr.shape, jnp.float32)

            def kv_body(kc, kcarry):
                kv0 = pl.multiple_of(kc * tq, tq)

                # Causal tile skip: KV tiles strictly above the diagonal are all masked.
                @pl.when(kv0 <= r0)
                def _():
                    k_blk = k_scr[pl.ds(kv0, tq), pl.ds(_col, hd)]  # (tq, hd)
                    v_blk = v_scr[pl.ds(kv0, tq), pl.ds(_col, hd)]
                    # Scores without transposing K: contract the last (hd) axes.
                    s = lax.dot_general(q_blk, k_blk, (((1,), (1,)), ((), ())),
                                        preferred_element_type=jnp.float32)  # (tq, tq)
                    rows = r0 + lax.broadcasted_iota(jnp.int32, (tq, tq), 0)
                    cols = kv0 + lax.broadcasted_iota(jnp.int32, (tq, tq), 1)
                    s = jnp.where(cols <= rows, s, jnp.float32(-1e30))
                    m_prev = m_scr[...]
                    m_new = jnp.maximum(m_prev, jnp.max(s, axis=-1, keepdims=True))
                    alpha = jnp.exp(m_prev - m_new)
                    p = jnp.exp(s - m_new)                                   # f32
                    l_scr[...] = alpha * l_scr[...] + jnp.sum(p, axis=-1, keepdims=True)
                    pacc_scr[...] = alpha * pacc_scr[...] + jnp.dot(
                        p.astype(cdt), v_blk, preferred_element_type=jnp.float32)
                    m_scr[...] = m_new
                return kcarry

            lax.fori_loop(0, n_chunks, kv_body, 0)

            # One reciprocal per row (EUP slot), applied to the PV accumulator.
            y = pacc_scr[...] * pl.reciprocal(l_scr[...], approx=approx_recip)
            y_scr[pl.ds(r0, tq), pl.ds(_col, hd)] = y.astype(cdt)
            return carry

        lax.fori_loop(0, n_chunks, q_chunk_body, 0)

    # ---- Fold this group's heads into the output projection accumulator:
    #      acc (+)= y_group (T, G*hd) @ W_proj^T[group rows] (G*hd, C); K = G*hd.
    wp_g = wp_ref[widx]                            # (G*hd, C)

    def fold(first):
        def body(c, carry):
            r0 = pl.multiple_of(c * tq, tq)
            contrib = jnp.dot(y_scr[pl.ds(r0, tq), :], wp_g,
                              preferred_element_type=jnp.float32)   # (tq, C)
            if first:
                acc_scr[pl.ds(r0, tq), :] = contrib   # first group: pure write (no RMW)
            else:
                acc_scr[pl.ds(r0, tq), :] += contrib
            return carry
        lax.fori_loop(0, n_chunks, body, 0)

    @pl.when(g == 0)
    def _():
        fold(True)

    if n_groups > 1:
        @pl.when(g > 0)
        def _():
            fold(False)

    # ---- Last group: add the projection bias and emit the output block.
    @pl.when(g == n_groups - 1)
    def _():
        o_ref[0] = (acc_scr[...] + bp_ref[...]).astype(o_ref.dtype)


def causal_self_attention(x, w_attn, b_attn, w_proj, b_proj, *, n_head,
                          compute_dtype=None, q_chunk_cap=512):
    """minGPT CausalSelfAttention forward (eval mode).

    x:       (B, T, C)
    w_attn:  (3C, C)  (PyTorch nn.Linear weight: (out_features, in_features))
    b_attn:  (3C,)
    w_proj:  (C, C)
    b_proj:  (C,)
    compute_dtype: MXU operand dtype.  Defaults to bfloat16 for f32 inputs
                   (accumulation, softmax and the output stay f32 / x.dtype).
                   Pass jnp.float32 for exact module semantics.
    """
    x = jnp.asarray(x)
    B, T, C = x.shape
    assert C % n_head == 0
    hd = C // n_head

    if compute_dtype is None:
        compute_dtype = jnp.bfloat16 if x.dtype == jnp.float32 else x.dtype
    cdt = compute_dtype
    approx_recip = np.dtype(cdt) != np.dtype(np.float32)

    G = _pick_head_group(n_head, hd)               # heads per grid step
    gw = G * hd                                    # group lane width
    n_groups = n_head // G
    tq = _pick_q_chunk(T, q_chunk_cap)

    w_attn = jnp.asarray(w_attn, jnp.float32)
    b_attn = jnp.asarray(b_attn, jnp.float32)
    w_proj = jnp.asarray(w_proj, jnp.float32)
    b_proj = jnp.asarray(b_proj, jnp.float32)

    def group_cols(w):                             # (C_out=C, C_in=C) -> (n_groups, C, gw)
        return w.T.reshape(C, n_groups, gw).transpose(1, 0, 2)

    wq_grp = group_cols(w_attn[0 * C:1 * C]).astype(cdt)
    wk_grp = group_cols(w_attn[1 * C:2 * C]).astype(cdt)
    wv_grp = group_cols(w_attn[2 * C:3 * C]).astype(cdt)
    bq_grp = b_attn[0 * C:1 * C].reshape(n_groups, 1, gw)       # biases stay f32
    bk_grp = b_attn[1 * C:2 * C].reshape(n_groups, 1, gw)
    bv_grp = b_attn[2 * C:3 * C].reshape(n_groups, 1, gw)
    wp_grp = w_proj.T.reshape(n_groups, gw, C).astype(cdt)      # rows of W_proj^T per group
    bp = b_proj.reshape(1, C)

    x_c = x.astype(cdt)                            # cast once in the wrapper

    # ---- Per-generation VMEM plan.
    vmem_cap = _vmem_capacity_bytes()
    wb = np.dtype(cdt).itemsize
    f32 = 4
    weight_bytes_full = 4 * C * C * wb + 4 * C * f32
    weights_resident = 2 * weight_bytes_full <= min(24 << 20, int(0.3 * vmem_cap))

    w_stream = weight_bytes_full if weights_resident else (4 * C * gw * wb + 4 * gw * f32)
    scratch_bytes = 4 * T * gw * wb + T * C * f32 + (2 * tq + tq * hd) * f32
    tmp_bytes = (3 * T * gw + 3 * tq * tq + 2 * tq * C) * f32
    est = (2 * (T * C * wb + T * C * x.dtype.itemsize + w_stream)
           + scratch_bytes + tmp_bytes + (8 << 20))
    vmem_limit = int(min(int(0.85 * vmem_cap), max(32 << 20, est)))

    if weights_resident:
        wq_spec = pl.BlockSpec((n_groups, C, gw), lambda b, g: (0, 0, 0))
        wk_spec = pl.BlockSpec((n_groups, C, gw), lambda b, g: (0, 0, 0))
        wv_spec = pl.BlockSpec((n_groups, C, gw), lambda b, g: (0, 0, 0))
        bq_spec = pl.BlockSpec((n_groups, 1, gw), lambda b, g: (0, 0, 0))
        bk_spec = pl.BlockSpec((n_groups, 1, gw), lambda b, g: (0, 0, 0))
        bv_spec = pl.BlockSpec((n_groups, 1, gw), lambda b, g: (0, 0, 0))
        wp_spec = pl.BlockSpec((n_groups, gw, C), lambda b, g: (0, 0, 0))
    else:
        wq_spec = pl.BlockSpec((1, C, gw), lambda b, g: (g, 0, 0))
        wk_spec = pl.BlockSpec((1, C, gw), lambda b, g: (g, 0, 0))
        wv_spec = pl.BlockSpec((1, C, gw), lambda b, g: (g, 0, 0))
        bq_spec = pl.BlockSpec((1, 1, gw), lambda b, g: (g, 0, 0))
        bk_spec = pl.BlockSpec((1, 1, gw), lambda b, g: (g, 0, 0))
        bv_spec = pl.BlockSpec((1, 1, gw), lambda b, g: (g, 0, 0))
        wp_spec = pl.BlockSpec((1, gw, C), lambda b, g: (g, 0, 0))

    kernel = functools.partial(
        _attn_kernel, heads_per_group=G, head_dim=hd, seq_len=T, q_chunk=tq,
        n_groups=n_groups, compute_dtype=cdt, approx_recip=approx_recip,
        weights_resident=weights_resident)

    return pl.pallas_call(
        kernel,
        out_shape=jax.ShapeDtypeStruct((B, T, C), x.dtype),
        grid_spec=pltpu.PrefetchScalarGridSpec(
            num_scalar_prefetch=0,
            grid=(B, n_groups),
            in_specs=[
                pl.BlockSpec((1, T, C), lambda b, g: (b, 0, 0)),   # x (revisited over g)
                wq_spec, wk_spec, wv_spec,
                bq_spec, bk_spec, bv_spec,
                wp_spec,
                pl.BlockSpec((1, C), lambda b, g: (0, 0)),          # b_proj
            ],
            out_specs=pl.BlockSpec((1, T, C), lambda b, g: (b, 0, 0)),
            scratch_shapes=[
                pltpu.VMEM((T, gw), cdt),          # q (current group)
                pltpu.VMEM((T, gw), cdt),          # k (current group, pre-scaled)
                pltpu.VMEM((T, gw), cdt),          # v (current group)
                pltpu.VMEM((T, gw), cdt),          # y (normalized head outputs)
                pltpu.VMEM((T, C), jnp.float32),   # output-projection accumulator
                pltpu.VMEM((tq, 1), jnp.float32),  # online-softmax running max
                pltpu.VMEM((tq, 1), jnp.float32),  # online-softmax running sum
                pltpu.VMEM((tq, hd), jnp.float32), # P@V accumulator
            ]),
        compiler_params=pltpu.CompilerParams(
            dimension_semantics=("parallel", "arbitrary"),
            vmem_limit_bytes=vmem_limit),
    )(x_c, wq_grp, wk_grp, wv_grp, bq_grp, bk_grp, bv_grp, wp_grp, bp)


def _reference(x, w_attn, b_attn, w_proj, b_proj, n_head):
    """Pure-JAX reference mirroring the PyTorch forward (eval mode)."""
    B, T, C = x.shape
    hd = C // n_head
    qkv = x @ w_attn.T + b_attn                      # (B, T, 3C)
    q, k, v = jnp.split(qkv, 3, axis=2)
    q = q.reshape(B, T, n_head, hd).transpose(0, 2, 1, 3)
    k = k.reshape(B, T, n_head, hd).transpose(0, 2, 1, 3)
    v = v.reshape(B, T, n_head, hd).transpose(0, 2, 1, 3)
    att = jnp.einsum("bhqd,bhkd->bhqk", q, k) * (1.0 / math.sqrt(hd))
    mask = jnp.tril(jnp.ones((T, T), dtype=bool))
    att = jnp.where(mask[None, None], att, -jnp.inf)
    att = jax.nn.softmax(att, axis=-1)
    y = jnp.einsum("bhqk,bhkd->bhqd", att, v)
    y = y.transpose(0, 2, 1, 3).reshape(B, T, C)
    return y @ w_proj.T + b_proj


if __name__ == "__main__":
    # Small config consistent with the module: n_embd=32, n_head=4, block_size>=T.
    B, T, C, n_head = 2, 8, 32, 4

    key = jax.random.PRNGKey(0)
    kx, kw1, kb1, kw2, kb2 = jax.random.split(key, 5)

    x = jax.random.normal(kx, (B, T, C), dtype=jnp.float32)
    w_attn = 0.02 * jax.random.normal(kw1, (3 * C, C), dtype=jnp.float32)
    b_attn = 0.02 * jax.random.normal(kb1, (3 * C,), dtype=jnp.float32)
    w_proj = 0.02 * jax.random.normal(kw2, (C, C), dtype=jnp.float32)
    b_proj = 0.02 * jax.random.normal(kb2, (C,), dtype=jnp.float32)

    ref = _reference(x, w_attn, b_attn, w_proj, b_proj, n_head)

    # Exact-semantics path (f32 MXU operands).
    out_f32 = causal_self_attention(x, w_attn, b_attn, w_proj, b_proj,
                                    n_head=n_head, compute_dtype=jnp.float32)
    out_f32 = jax.block_until_ready(out_f32)
    assert out_f32.shape == (B, T, C)
    assert jnp.allclose(out_f32, ref, atol=1e-4, rtol=1e-4), "f32 kernel mismatch vs reference"

    # Default path: bf16 MXU operands, f32 accumulation/softmax (looser tolerance).
    out_def = causal_self_attention(x, w_attn, b_attn, w_proj, b_proj, n_head=n_head)
    out_def = jax.block_until_ready(out_def)
    assert out_def.dtype == x.dtype
    assert jnp.allclose(out_def, ref, atol=2e-2, rtol=2e-2), "bf16 kernel mismatch vs reference"

    print("KERNEL_OK")
</pallas_src>

<mosaic_0001>
module attributes {stable_mosaic.version = 11 : i64} {
  func.func @_attn_kernel(%arg0: i32, %arg1: i32, %arg2: memref<1x8x32xf32, #tpu.memory_space<vmem>>, %arg3: memref<1x32x32xf32, #tpu.memory_space<vmem>>, %arg4: memref<1x32x32xf32, #tpu.memory_space<vmem>>, %arg5: memref<1x32x32xf32, #tpu.memory_space<vmem>>, %arg6: memref<1x1x32xf32, #tpu.memory_space<vmem>>, %arg7: memref<1x1x32xf32, #tpu.memory_space<vmem>>, %arg8: memref<1x1x32xf32, #tpu.memory_space<vmem>>, %arg9: memref<1x32x32xf32, #tpu.memory_space<vmem>>, %arg10: memref<1x32xf32, #tpu.memory_space<vmem>>, %arg11: memref<1x8x32xf32, #tpu.memory_space<vmem>>, %arg12: memref<8x32xf32, #tpu.memory_space<vmem>>, %arg13: memref<8x32xf32, #tpu.memory_space<vmem>>, %arg14: memref<8x32xf32, #tpu.memory_space<vmem>>, %arg15: memref<8x32xf32, #tpu.memory_space<vmem>>, %arg16: memref<8x32xf32, #tpu.memory_space<vmem>>, %arg17: memref<8x1xf32, #tpu.memory_space<vmem>>, %arg18: memref<8x1xf32, #tpu.memory_space<vmem>>, %arg19: memref<8x8xf32, #tpu.memory_space<vmem>>) attributes {dimension_semantics = [#tpu.dimension_semantics<parallel>, #tpu.dimension_semantics<arbitrary>], iteration_bounds = array<i64: 2, 1>, scalar_prefetch = 0 : i64, scratch_operands = 8 : i64, tpu.core_type = #tpu.core_type<tc>, window_params = [{transform_indices = @transform_0, window_bounds = array<i64: 1, 8, 32>}, {pipeline_mode = #tpu.pipeline_mode<synchronous>, transform_indices = @transform_1, window_bounds = array<i64: 1, 32, 32>}, {pipeline_mode = #tpu.pipeline_mode<synchronous>, transform_indices = @transform_2, window_bounds = array<i64: 1, 32, 32>}, {pipeline_mode = #tpu.pipeline_mode<synchronous>, transform_indices = @transform_3, window_bounds = array<i64: 1, 32, 32>}, {pipeline_mode = #tpu.pipeline_mode<synchronous>, transform_indices = @transform_4, window_bounds = array<i64: 1, 1, 32>}, {pipeline_mode = #tpu.pipeline_mode<synchronous>, transform_indices = @transform_5, window_bounds = array<i64: 1, 1, 32>}, {pipeline_mode = #tpu.pipeline_mode<synchronous>, transform_indices = @transform_6, window_bounds = array<i64: 1, 1, 32>}, {pipeline_mode = #tpu.pipeline_mode<synchronous>, transform_indices = @transform_7, window_bounds = array<i64: 1, 32, 32>}, {pipeline_mode = #tpu.pipeline_mode<synchronous>, transform_indices = @transform_8, window_bounds = array<i64: 1, 32>}, {transform_indices = @transform_9, window_bounds = array<i64: 1, 8, 32>}]} {
    %c0 = arith.constant 0 : index
    %c0_0 = arith.constant 0 : index
    %c0_1 = arith.constant 0 : index
    %0 = vector.load %arg2[%c0, %c0_0, %c0_1] : memref<1x8x32xf32, #tpu.memory_space<vmem>>, vector<1x8x32xf32>
    %1 = vector.shape_cast %0 : vector<1x8x32xf32> to vector<8x32xf32>
    %2 = arith.index_cast %arg1 : i32 to index
    %c0_2 = arith.constant 0 : index
    %c0_3 = arith.constant 0 : index
    %3 = vector.load %arg3[%2, %c0_2, %c0_3] : memref<1x32x32xf32, #tpu.memory_space<vmem>>, vector<1x32x32xf32>
    %4 = vector.shape_cast %3 : vector<1x32x32xf32> to vector<32x32xf32>
    %cst = arith.constant dense<0.000000e+00> : vector<8x32xf32>
    %5 = tpu.matmul %1, %4, %cst {dimension_numbers = #tpu.dot_dimension_numbers<[1], [0], [0], [1], [0, 0, 1, 1], [], []>} : vector<8x32xf32>, vector<32x32xf32>, vector<8x32xf32> -> vector<8x32xf32>
    %6 = arith.index_cast %arg1 : i32 to index
    %c0_4 = arith.constant 0 : index
    %c0_5 = arith.constant 0 : index
    %7 = vector.load %arg6[%6, %c0_4, %c0_5] : memref<1x1x32xf32, #tpu.memory_space<vmem>>, vector<1x1x32xf32>
    %8 = vector.shape_cast %7 : vector<1x1x32xf32> to vector<1x32xf32>
    %9 = vector.broadcast %8 : vector<1x32xf32> to vector<8x32xf32>
    %10 = arith.addf %5, %9 : vector<8x32xf32>
    %11 = arith.index_cast %arg1 : i32 to index
    %c0_6 = arith.constant 0 : index
    %c0_7 = arith.constant 0 : index
    %12 = vector.load %arg4[%11, %c0_6, %c0_7] : memref<1x32x32xf32, #tpu.memory_space<vmem>>, vector<1x32x32xf32>
    %13 = vector.shape_cast %12 : vector<1x32x32xf32> to vector<32x32xf32>
    %cst_8 = arith.constant dense<0.000000e+00> : vector<8x32xf32>
    %14 = tpu.matmul %1, %13, %cst_8 {dimension_numbers = #tpu.dot_dimension_numbers<[1], [0], [0], [1], [0, 0, 1, 1], [], []>} : vector<8x32xf32>, vector<32x32xf32>, vector<8x32xf32> -> vector<8x32xf32>
    %15 = arith.index_cast %arg1 : i32 to index
    %c0_9 = arith.constant 0 : index
    %c0_10 = arith.constant 0 : index
    %16 = vector.load %arg7[%15, %c0_9, %c0_10] : memref<1x1x32xf32, #tpu.memory_space<vmem>>, vector<1x1x32xf32>
    %17 = vector.shape_cast %16 : vector<1x1x32xf32> to vector<1x32xf32>
    %18 = vector.broadcast %17 : vector<1x32xf32> to vector<8x32xf32>
    %19 = arith.addf %14, %18 : vector<8x32xf32>
    %20 = arith.index_cast %arg1 : i32 to index
    %c0_11 = arith.constant 0 : index
    %c0_12 = arith.constant 0 : index
    %21 = vector.load %arg5[%20, %c0_11, %c0_12] : memref<1x32x32xf32, #tpu.memory_space<vmem>>, vector<1x32x32xf32>
    %22 = vector.shape_cast %21 : vector<1x32x32xf32> to vector<32x32xf32>
    %cst_13 = arith.constant dense<0.000000e+00> : vector<8x32xf32>
    %23 = tpu.matmul %1, %22, %cst_13 {dimension_numbers = #tpu.dot_dimension_numbers<[1], [0], [0], [1], [0, 0, 1, 1], [], []>} : vector<8x32xf32>, vector<32x32xf32>, vector<8x32xf32> -> vector<8x32xf32>
    %24 = arith.index_cast %arg1 : i32 to index
    %c0_14 = arith.constant 0 : index
    %c0_15 = arith.constant 0 : index
    %25 = vector.load %arg8[%24, %c0_14, %c0_15] : memref<1x1x32xf32, #tpu.memory_space<vmem>>, vector<1x1x32xf32>
    %26 = vector.shape_cast %25 : vector<1x1x32xf32> to vector<1x32xf32>
    %27 = vector.broadcast %26 : vector<1x32xf32> to vector<8x32xf32>
    %28 = arith.addf %23, %27 : vector<8x32xf32>
    %c0_16 = arith.constant 0 : index
    %c0_17 = arith.constant 0 : index
    %29 = vector.load %arg12[%c0_16, %c0_17] : memref<8x32xf32, #tpu.memory_space<vmem>>, vector<8x32xf32>
    tpu.vector_store %arg12[%c0_16, %c0_17], %10 {strides = array<i32>} : memref<8x32xf32, #tpu.memory_space<vmem>>, vector<8x32xf32>,
    %cst_18 = arith.constant 0.353553385 : f32
    %30 = vector.broadcast %cst_18 : f32 to vector<8x32xf32>
    %31 = arith.mulf %19, %30 : vector<8x32xf32>
    %c0_19 = arith.constant 0 : index
    %c0_20 = arith.constant 0 : index
    %32 = vector.load %arg13[%c0_19, %c0_20] : memref<8x32xf32, #tpu.memory_space<vmem>>, vector<8x32xf32>
    tpu.vector_store %arg13[%c0_19, %c0_20], %31 {strides = array<i32>} : memref<8x32xf32, #tpu.memory_space<vmem>>, vector<8x32xf32>,
    %c0_21 = arith.constant 0 : index
    %c0_22 = arith.constant 0 : index
    %33 = vector.load %arg14[%c0_21, %c0_22] : memref<8x32xf32, #tpu.memory_space<vmem>>, vector<8x32xf32>
    tpu.vector_store %arg14[%c0_21, %c0_22], %28 {strides = array<i32>} : memref<8x32xf32, #tpu.memory_space<vmem>>, vector<8x32xf32>,
    %c0_i32 = arith.constant 0 : i32
    %c8_i32 = arith.constant 8 : i32
    %34 = arith.muli %c0_i32, %c8_i32 : i32
    %35 = tpu.assume_multiple %34, 8 : i32
    %36 = arith.index_cast %35 : i32 to index
    %c0_23 = arith.constant 0 : index
    %37 = vector.load %arg12[%36, %c0_23] : memref<8x32xf32, #tpu.memory_space<vmem>>, vector<8x8xf32>
    %cst_24 = arith.constant 0xFF800000 : f32
    %38 = vector.broadcast %cst_24 : f32 to vector<8x1xf32>
    %c0_25 = arith.constant 0 : index
    %c0_26 = arith.constant 0 : index
    %39 = vector.load %arg17[%c0_25, %c0_26] : memref<8x1xf32, #tpu.memory_space<vmem>>, vector<8x1xf32>
    tpu.vector_store %arg17[%c0_25, %c0_26], %38 {strides = array<i32>} : memref<8x1xf32, #tpu.memory_space<vmem>>, vector<8x1xf32>,
    %cst_27 = arith.constant 0.000000e+00 : f32
    %40 = vector.broadcast %cst_27 : f32 to vector<8x1xf32>
    %c0_28 = arith.constant 0 : index
    %c0_29 = arith.constant 0 : index
    %41 = vector.load %arg18[%c0_28, %c0_29] : memref<8x1xf32, #tpu.memory_space<vmem>>, vector<8x1xf32>
    tpu.vector_store %arg18[%c0_28, %c0_29], %40 {strides = array<i32>} : memref<8x1xf32, #tpu.memory_space<vmem>>, vector<8x1xf32>,
    %cst_30 = arith.constant 0.000000e+00 : f32
    %42 = vector.broadcast %cst_30 : f32 to vector<8x8xf32>
    %c0_31 = arith.constant 0 : index
    %c0_32 = arith.constant 0 : index
    %43 = vector.load %arg19[%c0_31, %c0_32] : memref<8x8xf32, #tpu.memory_space<vmem>>, vector<8x8xf32>
    tpu.vector_store %arg19[%c0_31, %c0_32], %42 {strides = array<i32>} : memref<8x8xf32, #tpu.memory_space<vmem>>, vector<8x8xf32>,
    %c0_i32_33 = arith.constant 0 : i32
    %c8_i32_34 = arith.constant 8 : i32
    %44 = arith.muli %c0_i32_33, %c8_i32_34 : i32
    %45 = tpu.assume_multiple %44, 8 : i32
    %46 = arith.cmpi sle, %45, %35 : i32
    %47 = arith.extui %46 : i1 to i32
    %c0_i32_35 = arith.constant 0 : i32
    %48 = arith.cmpi ne, %47, %c0_i32_35 : i32
    scf.if %48 {
      %131 = arith.index_cast %45 : i32 to index
      %c0_111 = arith.constant 0 : index
      %132 = vector.load %arg13[%131, %c0_111] : memref<8x32xf32, #tpu.memory_space<vmem>>, vector<8x8xf32>
      %133 = arith.index_cast %45 : i32 to index
      %c0_112 = arith.constant 0 : index
      %134 = vector.load %arg14[%133, %c0_112] : memref<8x32xf32, #tpu.memory_space<vmem>>, vector<8x8xf32>
      %cst_113 = arith.constant dense<0.000000e+00> : vector<8x8xf32>
      %135 = tpu.matmul %37, %132, %cst_113 {dimension_numbers = #tpu.dot_dimension_numbers<[1], [1], [0], [0], [0, 0, 1, 0], [], []>} : vector<8x8xf32>, vector<8x8xf32>, vector<8x8xf32> -> vector<8x8xf32>
      %136 = tpu.iota {dimensions = array<i32: 0>} : vector<8x8xi32>
      %137 = vector.broadcast %35 : i32 to vector<8x8xi32>
      %138 = arith.addi %137, %136 : vector<8x8xi32>
      %139 = tpu.iota {dimensions = array<i32: 1>} : vector<8x8xi32>
      %140 = vector.broadcast %45 : i32 to vector<8x8xi32>
      %141 = arith.addi %140, %139 : vector<8x8xi32>
      %142 = arith.cmpi sle, %141, %138 : vector<8x8xi32>
      %cst_114 = arith.constant -1.000000e+30 : f32
      %143 = vector.broadcast %cst_114 : f32 to vector<8x8xf32>
      %144 = arith.select %142, %135, %143 : vector<8x8xi1>, vector<8x8xf32>
      %c0_115 = arith.constant 0 : index
      %c0_116 = arith.constant 0 : index
      %145 = vector.load %arg17[%c0_115, %c0_116] : memref<8x1xf32, #tpu.memory_space<vmem>>, vector<8x1xf32>
      %cst_117 = arith.constant dense<0xFF800000> : vector<8xf32>
      %146 = vector.multi_reduction <maximumf>, %144, %cst_117 [1] : vector<8x8xf32> to vector<8xf32>
      %147 = vector.shape_cast %146 : vector<8xf32> to vector<8x1xf32>
      %148 = arith.maximumf %145, %147 : vector<8x1xf32>
      %149 = arith.subf %145, %148 : vector<8x1xf32>
      %150 = math.exp %149 : vector<8x1xf32>
      %151 = vector.broadcast %148 : vector<8x1xf32> to vector<8x8xf32>
      %152 = arith.subf %144, %151 : vector<8x8xf32>
      %153 = math.exp %152 : vector<8x8xf32>
      %c0_118 = arith.constant 0 : index
      %c0_119 = arith.constant 0 : index
      %154 = vector.load %arg18[%c0_118, %c0_119] : memref<8x1xf32, #tpu.memory_space<vmem>>, vector<8x1xf32>
      %155 = arith.mulf %150, %154 : vector<8x1xf32>
      %cst_120 = arith.constant dense<0.000000e+00> : vector<8xf32>
      %156 = vector.multi_reduction <add>, %153, %cst_120 [1] : vector<8x8xf32> to vector<8xf32>
      %157 = vector.shape_cast %156 : vector<8xf32> to vector<8x1xf32>
      %158 = arith.addf %155, %157 : vector<8x1xf32>
      %c0_121 = arith.constant 0 : index
      %c0_122 = arith.constant 0 : index
      %159 = vector.load %arg18[%c0_121, %c0_122] : memref<8x1xf32, #tpu.memory_space<vmem>>, vector<8x1xf32>
      tpu.vector_store %arg18[%c0_121, %c0_122], %158 {strides = array<i32>} : memref<8x1xf32, #tpu.memory_space<vmem>>, vector<8x1xf32>,
      %c0_123 = arith.constant 0 : index
      %c0_124 = arith.constant 0 : index
      %160 = vector.load %arg19[%c0_123, %c0_124] : memref<8x8xf32, #tpu.memory_space<vmem>>, vector<8x8xf32>
      %161 = vector.broadcast %150 : vector<8x1xf32> to vector<8x8xf32>
      %162 = arith.mulf %161, %160 : vector<8x8xf32>
      %cst_125 = arith.constant dense<0.000000e+00> : vector<8x8xf32>
      %163 = tpu.matmul %153, %134, %cst_125 {dimension_numbers = #tpu.dot_dimension_numbers<[1], [0], [0], [1], [0, 0, 1, 1], [], []>} : vector<8x8xf32>, vector<8x8xf32>, vector<8x8xf32> -> vector<8x8xf32>
      %164 = arith.addf %162, %163 : vector<8x8xf32>
      %c0_126 = arith.constant 0 : index
      %c0_127 = arith.constant 0 : index
      %165 = vector.load %arg19[%c0_126, %c0_127] : memref<8x8xf32, #tpu.memory_space<vmem>>, vector<8x8xf32>
      tpu.vector_store %arg19[%c0_126, %c0_127], %164 {strides = array<i32>} : memref<8x8xf32, #tpu.memory_space<vmem>>, vector<8x8xf32>,
      %c0_128 = arith.constant 0 : index
      %c0_129 = arith.constant 0 : index
      %166 = vector.load %arg17[%c0_128, %c0_129] : memref<8x1xf32, #tpu.memory_space<vmem>>, vector<8x1xf32>
      tpu.vector_store %arg17[%c0_128, %c0_129], %148 {strides = array<i32>} : memref<8x1xf32, #tpu.memory_space<vmem>>, vector<8x1xf32>,
    } else {
    }
    %c1_i32 = arith.constant 1 : i32
    %c0_36 = arith.constant 0 : index
    %c0_37 = arith.constant 0 : index
    %49 = vector.load %arg19[%c0_36, %c0_37] : memref<8x8xf32, #tpu.memory_space<vmem>>, vector<8x8xf32>
    %c0_38 = arith.constant 0 : index
    %c0_39 = arith.constant 0 : index
    %50 = vector.load %arg18[%c0_38, %c0_39] : memref<8x1xf32, #tpu.memory_space<vmem>>, vector<8x1xf32>
    %51 = tpu.reciprocal %50 : vector<8x1xf32> -> vector<8x1xf32>
    %52 = vector.broadcast %51 : vector<8x1xf32> to vector<8x8xf32>
    %53 = arith.mulf %49, %52 : vector<8x8xf32>
    %54 = arith.index_cast %35 : i32 to index
    %c0_40 = arith.constant 0 : index
    %55 = vector.load %arg15[%54, %c0_40] : memref<8x32xf32, #tpu.memory_space<vmem>>, vector<8x8xf32>
    tpu.vector_store %arg15[%54, %c0_40], %53 {strides = array<i32>} : memref<8x32xf32, #tpu.memory_space<vmem>>, vector<8x8xf32>,
    %c1_i32_41 = arith.constant 1 : i32
    %c0_i32_42 = arith.constant 0 : i32
    %c8_i32_43 = arith.constant 8 : i32
    %56 = arith.muli %c0_i32_42, %c8_i32_43 : i32
    %57 = tpu.assume_multiple %56, 8 : i32
    %58 = arith.index_cast %57 : i32 to index
    %c8 = arith.constant 8 : index
    %59 = vector.load %arg12[%58, %c8] : memref<8x32xf32, #tpu.memory_space<vmem>>, vector<8x8xf32>
    %cst_44 = arith.constant 0xFF800000 : f32
    %60 = vector.broadcast %cst_44 : f32 to vector<8x1xf32>
    %c0_45 = arith.constant 0 : index
    %c0_46 = arith.constant 0 : index
    %61 = vector.load %arg17[%c0_45, %c0_46] : memref<8x1xf32, #tpu.memory_space<vmem>>, vector<8x1xf32>
    tpu.vector_store %arg17[%c0_45, %c0_46], %60 {strides = array<i32>} : memref<8x1xf32, #tpu.memory_space<vmem>>, vector<8x1xf32>,
    %cst_47 = arith.constant 0.000000e+00 : f32
    %62 = vector.broadcast %cst_47 : f32 to vector<8x1xf32>
    %c0_48 = arith.constant 0 : index
    %c0_49 = arith.constant 0 : index
    %63 = vector.load %arg18[%c0_48, %c0_49] : memref<8x1xf32, #tpu.memory_space<vmem>>, vector<8x1xf32>
    tpu.vector_store %arg18[%c0_48, %c0_49], %62 {strides = array<i32>} : memref<8x1xf32, #tpu.memory_space<vmem>>, vector<8x1xf32>,
    %cst_50 = arith.constant 0.000000e+00 : f32
    %64 = vector.broadcast %cst_50 : f32 to vector<8x8xf32>
    %c0_51 = arith.constant 0 : index
    %c0_52 = arith.constant 0 : index
    %65 = vector.load %arg19[%c0_51, %c0_52] : memref<8x8xf32, #tpu.memory_space<vmem>>, vector<8x8xf32>
    tpu.vector_store %arg19[%c0_51, %c0_52], %64 {strides = array<i32>} : memref<8x8xf32, #tpu.memory_space<vmem>>, vector<8x8xf32>,
    %c0_i32_53 = arith.constant 0 : i32
    %c8_i32_54 = arith.constant 8 : i32
    %66 = arith.muli %c0_i32_53, %c8_i32_54 : i32
    %67 = tpu.assume_multiple %66, 8 : i32
    %68 = arith.cmpi sle, %67, %57 : i32
    %69 = arith.extui %68 : i1 to i32
    %c0_i32_55 = arith.constant 0 : i32
    %70 = arith.cmpi ne, %69, %c0_i32_55 : i32
    scf.if %70 {
      %131 = arith.index_cast %67 : i32 to index
      %c8_111 = arith.constant 8 : index
      %132 = vector.load %arg13[%131, %c8_111] : memref<8x32xf32, #tpu.memory_space<vmem>>, vector<8x8xf32>
      %133 = arith.index_cast %67 : i32 to index
      %c8_112 = arith.constant 8 : index
      %134 = vector.load %arg14[%133, %c8_112] : memref<8x32xf32, #tpu.memory_space<vmem>>, vector<8x8xf32>
      %cst_113 = arith.constant dense<0.000000e+00> : vector<8x8xf32>
      %135 = tpu.matmul %59, %132, %cst_113 {dimension_numbers = #tpu.dot_dimension_numbers<[1], [1], [0], [0], [0, 0, 1, 0], [], []>} : vector<8x8xf32>, vector<8x8xf32>, vector<8x8xf32> -> vector<8x8xf32>
      %136 = tpu.iota {dimensions = array<i32: 0>} : vector<8x8xi32>
      %137 = vector.broadcast %57 : i32 to vector<8x8xi32>
      %138 = arith.addi %137, %136 : vector<8x8xi32>
      %139 = tpu.iota {dimensions = array<i32: 1>} : vector<8x8xi32>
      %140 = vector.broadcast %67 : i32 to vector<8x8xi32>
      %141 = arith.addi %140, %139 : vector<8x8xi32>
      %142 = arith.cmpi sle, %141, %138 : vector<8x8xi32>
      %cst_114 = arith.constant -1.000000e+30 : f32
      %143 = vector.broadcast %cst_114 : f32 to vector<8x8xf32>
      %144 = arith.select %142, %135, %143 : vector<8x8xi1>, vector<8x8xf32>
      %c0_115 = arith.constant 0 : index
      %c0_116 = arith.constant 0 : index
      %145 = vector.load %arg17[%c0_115, %c0_116] : memref<8x1xf32, #tpu.memory_space<vmem>>, vector<8x1xf32>
      %cst_117 = arith.constant dense<0xFF800000> : vector<8xf32>
      %146 = vector.multi_reduction <maximumf>, %144, %cst_117 [1] : vector<8x8xf32> to vector<8xf32>
      %147 = vector.shape_cast %146 : vector<8xf32> to vector<8x1xf32>
      %148 = arith.maximumf %145, %147 : vector<8x1xf32>
      %149 = arith.subf %145, %148 : vector<8x1xf32>
      %150 = math.exp %149 : vector<8x1xf32>
      %151 = vector.broadcast %148 : vector<8x1xf32> to vector<8x8xf32>
      %152 = arith.subf %144, %151 : vector<8x8xf32>
      %153 = math.exp %152 : vector<8x8xf32>
      %c0_118 = arith.constant 0 : index
      %c0_119 = arith.constant 0 : index
      %154 = vector.load %arg18[%c0_118, %c0_119] : memref<8x1xf32, #tpu.memory_space<vmem>>, vector<8x1xf32>
      %155 = arith.mulf %150, %154 : vector<8x1xf32>
      %cst_120 = arith.constant dense<0.000000e+00> : vector<8xf32>
      %156 = vector.multi_reduction <add>, %153, %cst_120 [1] : vector<8x8xf32> to vector<8xf32>
      %157 = vector.shape_cast %156 : vector<8xf32> to vector<8x1xf32>
      %158 = arith.addf %155, %157 : vector<8x1xf32>
      %c0_121 = arith.constant 0 : index
      %c0_122 = arith.constant 0 : index
      %159 = vector.load %arg18[%c0_121, %c0_122] : memref<8x1xf32, #tpu.memory_space<vmem>>, vector<8x1xf32>
      tpu.vector_store %arg18[%c0_121, %c0_122], %158 {strides = array<i32>} : memref<8x1xf32, #tpu.memory_space<vmem>>, vector<8x1xf32>,
      %c0_123 = arith.constant 0 : index
      %c0_124 = arith.constant 0 : index
      %160 = vector.load %arg19[%c0_123, %c0_124] : memref<8x8xf32, #tpu.memory_space<vmem>>, vector<8x8xf32>
      %161 = vector.broadcast %150 : vector<8x1xf32> to vector<8x8xf32>
      %162 = arith.mulf %161, %160 : vector<8x8xf32>
      %cst_125 = arith.constant dense<0.000000e+00> : vector<8x8xf32>
      %163 = tpu.matmul %153, %134, %cst_125 {dimension_numbers = #tpu.dot_dimension_numbers<[1], [0], [0], [1], [0, 0, 1, 1], [], []>} : vector<8x8xf32>, vector<8x8xf32>, vector<8x8xf32> -> vector<8x8xf32>
      %164 = arith.addf %162, %163 : vector<8x8xf32>
      %c0_126 = arith.constant 0 : index
      %c0_127 = arith.constant 0 : index
      %165 = vector.load %arg19[%c0_126, %c0_127] : memref<8x8xf32, #tpu.memory_space<vmem>>, vector<8x8xf32>
      tpu.vector_store %arg19[%c0_126, %c0_127], %164 {strides = array<i32>} : memref<8x8xf32, #tpu.memory_space<vmem>>, vector<8x8xf32>,
      %c0_128 = arith.constant 0 : index
      %c0_129 = arith.constant 0 : index
      %166 = vector.load %arg17[%c0_128, %c0_129] : memref<8x1xf32, #tpu.memory_space<vmem>>, vector<8x1xf32>
      tpu.vector_store %arg17[%c0_128, %c0_129], %148 {strides = array<i32>} : memref<8x1xf32, #tpu.memory_space<vmem>>, vector<8x1xf32>,
    } else {
    }
    %c1_i32_56 = arith.constant 1 : i32
    %c0_57 = arith.constant 0 : index
    %c0_58 = arith.constant 0 : index
    %71 = vector.load %arg19[%c0_57, %c0_58] : memref<8x8xf32, #tpu.memory_space<vmem>>, vector<8x8xf32>
    %c0_59 = arith.constant 0 : index
    %c0_60 = arith.constant 0 : index
    %72 = vector.load %arg18[%c0_59, %c0_60] : memref<8x1xf32, #tpu.memory_space<vmem>>, vector<8x1xf32>
    %73 = tpu.reciprocal %72 : vector<8x1xf32> -> vector<8x1xf32>
    %74 = vector.broadcast %73 : vector<8x1xf32> to vector<8x8xf32>
    %75 = arith.mulf %71, %74 : vector<8x8xf32>
    %76 = arith.index_cast %57 : i32 to index
    %c8_61 = arith.constant 8 : index
    %77 = vector.load %arg15[%76, %c8_61] : memref<8x32xf32, #tpu.memory_space<vmem>>, vector<8x8xf32>
    tpu.vector_store %arg15[%76, %c8_61], %75 {strides = array<i32>} : memref<8x32xf32, #tpu.memory_space<vmem>>, vector<8x8xf32>,
    %c1_i32_62 = arith.constant 1 : i32
    %c0_i32_63 = arith.constant 0 : i32
    %c8_i32_64 = arith.constant 8 : i32
    %78 = arith.muli %c0_i32_63, %c8_i32_64 : i32
    %79 = tpu.assume_multiple %78, 8 : i32
    %80 = arith.index_cast %79 : i32 to index
    %c16 = arith.constant 16 : index
    %81 = vector.load %arg12[%80, %c16] : memref<8x32xf32, #tpu.memory_space<vmem>>, vector<8x8xf32>
    %cst_65 = arith.constant 0xFF800000 : f32
    %82 = vector.broadcast %cst_65 : f32 to vector<8x1xf32>
    %c0_66 = arith.constant 0 : index
    %c0_67 = arith.constant 0 : index
    %83 = vector.load %arg17[%c0_66, %c0_67] : memref<8x1xf32, #tpu.memory_space<vmem>>, vector<8x1xf32>
    tpu.vector_store %arg17[%c0_66, %c0_67], %82 {strides = array<i32>} : memref<8x1xf32, #tpu.memory_space<vmem>>, vector<8x1xf32>,
    %cst_68 = arith.constant 0.000000e+00 : f32
    %84 = vector.broadcast %cst_68 : f32 to vector<8x1xf32>
    %c0_69 = arith.constant 0 : index
    %c0_70 = arith.constant 0 : index
    %85 = vector.load %arg18[%c0_69, %c0_70] : memref<8x1xf32, #tpu.memory_space<vmem>>, vector<8x1xf32>
    tpu.vector_store %arg18[%c0_69, %c0_70], %84 {strides = array<i32>} : memref<8x1xf32, #tpu.memory_space<vmem>>, vector<8x1xf32>,
    %cst_71 = arith.constant 0.000000e+00 : f32
    %86 = vector.broadcast %cst_71 : f32 to vector<8x8xf32>
    %c0_72 = arith.constant 0 : index
    %c0_73 = arith.constant 0 : index
    %87 = vector.load %arg19[%c0_72, %c0_73] : memref<8x8xf32, #tpu.memory_space<vmem>>, vector<8x8xf32>
    tpu.vector_store %arg19[%c0_72, %c0_73], %86 {strides = array<i32>} : memref<8x8xf32, #tpu.memory_space<vmem>>, vector<8x8xf32>,
    %c0_i32_74 = arith.constant 0 : i32
    %c8_i32_75 = arith.constant 8 : i32
    %88 = arith.muli %c0_i32_74, %c8_i32_75 : i32
    %89 = tpu.assume_multiple %88, 8 : i32
    %90 = arith.cmpi sle, %89, %79 : i32
    %91 = arith.extui %90 : i1 to i32
    %c0_i32_76 = arith.constant 0 : i32
    %92 = arith.cmpi ne, %91, %c0_i32_76 : i32
    scf.if %92 {
      %131 = arith.index_cast %89 : i32 to index
      %c16_111 = arith.constant 16 : index
      %132 = vector.load %arg13[%131, %c16_111] : memref<8x32xf32, #tpu.memory_space<vmem>>, vector<8x8xf32>
      %133 = arith.index_cast %89 : i32 to index
      %c16_112 = arith.constant 16 : index
      %134 = vector.load %arg14[%133, %c16_112] : memref<8x32xf32, #tpu.memory_space<vmem>>, vector<8x8xf32>
      %cst_113 = arith.constant dense<0.000000e+00> : vector<8x8xf32>
      %135 = tpu.matmul %81, %132, %cst_113 {dimension_numbers = #tpu.dot_dimension_numbers<[1], [1], [0], [0], [0, 0, 1, 0], [], []>} : vector<8x8xf32>, vector<8x8xf32>, vector<8x8xf32> -> vector<8x8xf32>
      %136 = tpu.iota {dimensions = array<i32: 0>} : vector<8x8xi32>
      %137 = vector.broadcast %79 : i32 to vector<8x8xi32>
      %138 = arith.addi %137, %136 : vector<8x8xi32>
      %139 = tpu.iota {dimensions = array<i32: 1>} : vector<8x8xi32>
      %140 = vector.broadcast %89 : i32 to vector<8x8xi32>
      %141 = arith.addi %140, %139 : vector<8x8xi32>
      %142 = arith.cmpi sle, %141, %138 : vector<8x8xi32>
      %cst_114 = arith.constant -1.000000e+30 : f32
      %143 = vector.broadcast %cst_114 : f32 to vector<8x8xf32>
      %144 = arith.select %142, %135, %143 : vector<8x8xi1>, vector<8x8xf32>
      %c0_115 = arith.constant 0 : index
      %c0_116 = arith.constant 0 : index
      %145 = vector.load %arg17[%c0_115, %c0_116] : memref<8x1xf32, #tpu.memory_space<vmem>>, vector<8x1xf32>
      %cst_117 = arith.constant dense<0xFF800000> : vector<8xf32>
      %146 = vector.multi_reduction <maximumf>, %144, %cst_117 [1] : vector<8x8xf32> to vector<8xf32>
      %147 = vector.shape_cast %146 : vector<8xf32> to vector<8x1xf32>
      %148 = arith.maximumf %145, %147 : vector<8x1xf32>
      %149 = arith.subf %145, %148 : vector<8x1xf32>
      %150 = math.exp %149 : vector<8x1xf32>
      %151 = vector.broadcast %148 : vector<8x1xf32> to vector<8x8xf32>
      %152 = arith.subf %144, %151 : vector<8x8xf32>
      %153 = math.exp %152 : vector<8x8xf32>
      %c0_118 = arith.constant 0 : index
      %c0_119 = arith.constant 0 : index
      %154 = vector.load %arg18[%c0_118, %c0_119] : memref<8x1xf32, #tpu.memory_space<vmem>>, vector<8x1xf32>
      %155 = arith.mulf %150, %154 : vector<8x1xf32>
      %cst_120 = arith.constant dense<0.000000e+00> : vector<8xf32>
      %156 = vector.multi_reduction <add>, %153, %cst_120 [1] : vector<8x8xf32> to vector<8xf32>
      %157 = vector.shape_cast %156 : vector<8xf32> to vector<8x1xf32>
      %158 = arith.addf %155, %157 : vector<8x1xf32>
      %c0_121 = arith.constant 0 : index
      %c0_122 = arith.constant 0 : index
      %159 = vector.load %arg18[%c0_121, %c0_122] : memref<8x1xf32, #tpu.memory_space<vmem>>, vector<8x1xf32>
      tpu.vector_store %arg18[%c0_121, %c0_122], %158 {strides = array<i32>} : memref<8x1xf32, #tpu.memory_space<vmem>>, vector<8x1xf32>,
      %c0_123 = arith.constant 0 : index
      %c0_124 = arith.constant 0 : index
      %160 = vector.load %arg19[%c0_123, %c0_124] : memref<8x8xf32, #tpu.memory_space<vmem>>, vector<8x8xf32>
      %161 = vector.broadcast %150 : vector<8x1xf32> to vector<8x8xf32>
      %162 = arith.mulf %161, %160 : vector<8x8xf32>
      %cst_125 = arith.constant dense<0.000000e+00> : vector<8x8xf32>
      %163 = tpu.matmul %153, %134, %cst_125 {dimension_numbers = #tpu.dot_dimension_numbers<[1], [0], [0], [1], [0, 0, 1, 1], [], []>} : vector<8x8xf32>, vector<8x8xf32>, vector<8x8xf32> -> vector<8x8xf32>
      %164 = arith.addf %162, %163 : vector<8x8xf32>
      %c0_126 = arith.constant 0 : index
      %c0_127 = arith.constant 0 : index
      %165 = vector.load %arg19[%c0_126, %c0_127] : memref<8x8xf32, #tpu.memory_space<vmem>>, vector<8x8xf32>
      tpu.vector_store %arg19[%c0_126, %c0_127], %164 {strides = array<i32>} : memref<8x8xf32, #tpu.memory_space<vmem>>, vector<8x8xf32>,
      %c0_128 = arith.constant 0 : index
      %c0_129 = arith.constant 0 : index
      %166 = vector.load %arg17[%c0_128, %c0_129] : memref<8x1xf32, #tpu.memory_space<vmem>>, vector<8x1xf32>
      tpu.vector_store %arg17[%c0_128, %c0_129], %148 {strides = array<i32>} : memref<8x1xf32, #tpu.memory_space<vmem>>, vector<8x1xf32>,
    } else {
    }
    %c1_i32_77 = arith.constant 1 : i32
    %c0_78 = arith.constant 0 : index
    %c0_79 = arith.constant 0 : index
    %93 = vector.load %arg19[%c0_78, %c0_79] : memref<8x8xf32, #tpu.memory_space<vmem>>, vector<8x8xf32>
    %c0_80 = arith.constant 0 : index
    %c0_81 = arith.constant 0 : index
    %94 = vector.load %arg18[%c0_80, %c0_81] : memref<8x1xf32, #tpu.memory_space<vmem>>, vector<8x1xf32>
    %95 = tpu.reciprocal %94 : vector<8x1xf32> -> vector<8x1xf32>
    %96 = vector.broadcast %95 : vector<8x1xf32> to vector<8x8xf32>
    %97 = arith.mulf %93, %96 : vector<8x8xf32>
    %98 = arith.index_cast %79 : i32 to index
    %c16_82 = arith.constant 16 : index
    %99 = vector.load %arg15[%98, %c16_82] : memref<8x32xf32, #tpu.memory_space<vmem>>, vector<8x8xf32>
    tpu.vector_store %arg15[%98, %c16_82], %97 {strides = array<i32>} : memref<8x32xf32, #tpu.memory_space<vmem>>, vector<8x8xf32>,
    %c1_i32_83 = arith.constant 1 : i32
    %c0_i32_84 = arith.constant 0 : i32
    %c8_i32_85 = arith.constant 8 : i32
    %100 = arith.muli %c0_i32_84, %c8_i32_85 : i32
    %101 = tpu.assume_multiple %100, 8 : i32
    %102 = arith.index_cast %101 : i32 to index
    %c24 = arith.constant 24 : index
    %103 = vector.load %arg12[%102, %c24] : memref<8x32xf32, #tpu.memory_space<vmem>>, vector<8x8xf32>
    %cst_86 = arith.constant 0xFF800000 : f32
    %104 = vector.broadcast %cst_86 : f32 to vector<8x1xf32>
    %c0_87 = arith.constant 0 : index
    %c0_88 = arith.constant 0 : index
    %105 = vector.load %arg17[%c0_87, %c0_88] : memref<8x1xf32, #tpu.memory_space<vmem>>, vector<8x1xf32>
    tpu.vector_store %arg17[%c0_87, %c0_88], %104 {strides = array<i32>} : memref<8x1xf32, #tpu.memory_space<vmem>>, vector<8x1xf32>,
    %cst_89 = arith.constant 0.000000e+00 : f32
    %106 = vector.broadcast %cst_89 : f32 to vector<8x1xf32>
    %c0_90 = arith.constant 0 : index
    %c0_91 = arith.constant 0 : index
    %107 = vector.load %arg18[%c0_90, %c0_91] : memref<8x1xf32, #tpu.memory_space<vmem>>, vector<8x1xf32>
    tpu.vector_store %arg18[%c0_90, %c0_91], %106 {strides = array<i32>} : memref<8x1xf32, #tpu.memory_space<vmem>>, vector<8x1xf32>,
    %cst_92 = arith.constant 0.000000e+00 : f32
    %108 = vector.broadcast %cst_92 : f32 to vector<8x8xf32>
    %c0_93 = arith.constant 0 : index
    %c0_94 = arith.constant 0 : index
    %109 = vector.load %arg19[%c0_93, %c0_94] : memref<8x8xf32, #tpu.memory_space<vmem>>, vector<8x8xf32>
    tpu.vector_store %arg19[%c0_93, %c0_94], %108 {strides = array<i32>} : memref<8x8xf32, #tpu.memory_space<vmem>>, vector<8x8xf32>,
    %c0_i32_95 = arith.constant 0 : i32
    %c8_i32_96 = arith.constant 8 : i32
    %110 = arith.muli %c0_i32_95, %c8_i32_96 : i32
    %111 = tpu.assume_multiple %110, 8 : i32
    %112 = arith.cmpi sle, %111, %101 : i32
    %113 = arith.extui %112 : i1 to i32
    %c0_i32_97 = arith.constant 0 : i32
    %114 = arith.cmpi ne, %113, %c0_i32_97 : i32
    scf.if %114 {
      %131 = arith.index_cast %111 : i32 to index
      %c24_111 = arith.constant 24 : index
      %132 = vector.load %arg13[%131, %c24_111] : memref<8x32xf32, #tpu.memory_space<vmem>>, vector<8x8xf32>
      %133 = arith.index_cast %111 : i32 to index
      %c24_112 = arith.constant 24 : index
      %134 = vector.load %arg14[%133, %c24_112] : memref<8x32xf32, #tpu.memory_space<vmem>>, vector<8x8xf32>
      %cst_113 = arith.constant dense<0.000000e+00> : vector<8x8xf32>
      %135 = tpu.matmul %103, %132, %cst_113 {dimension_numbers = #tpu.dot_dimension_numbers<[1], [1], [0], [0], [0, 0, 1, 0], [], []>} : vector<8x8xf32>, vector<8x8xf32>, vector<8x8xf32> -> vector<8x8xf32>
      %136 = tpu.iota {dimensions = array<i32: 0>} : vector<8x8xi32>
      %137 = vector.broadcast %101 : i32 to vector<8x8xi32>
      %138 = arith.addi %137, %136 : vector<8x8xi32>
      %139 = tpu.iota {dimensions = array<i32: 1>} : vector<8x8xi32>
      %140 = vector.broadcast %111 : i32 to vector<8x8xi32>
      %141 = arith.addi %140, %139 : vector<8x8xi32>
      %142 = arith.cmpi sle, %141, %138 : vector<8x8xi32>
      %cst_114 = arith.constant -1.000000e+30 : f32
      %143 = vector.broadcast %cst_114 : f32 to vector<8x8xf32>
      %144 = arith.select %142, %135, %143 : vector<8x8xi1>, vector<8x8xf32>
      %c0_115 = arith.constant 0 : index
      %c0_116 = arith.constant 0 : index
      %145 = vector.load %arg17[%c0_115, %c0_116] : memref<8x1xf32, #tpu.memory_space<vmem>>, vector<8x1xf32>
      %cst_117 = arith.constant dense<0xFF800000> : vector<8xf32>
      %146 = vector.multi_reduction <maximumf>, %144, %cst_117 [1] : vector<8x8xf32> to vector<8xf32>
      %147 = vector.shape_cast %146 : vector<8xf32> to vector<8x1xf32>
      %148 = arith.maximumf %145, %147 : vector<8x1xf32>
      %149 = arith.subf %145, %148 : vector<8x1xf32>
      %150 = math.exp %149 : vector<8x1xf32>
      %151 = vector.broadcast %148 : vector<8x1xf32> to vector<8x8xf32>
      %152 = arith.subf %144, %151 : vector<8x8xf32>
      %153 = math.exp %152 : vector<8x8xf32>
      %c0_118 = arith.constant 0 : index
      %c0_119 = arith.constant 0 : index
      %154 = vector.load %arg18[%c0_118, %c0_119] : memref<8x1xf32, #tpu.memory_space<vmem>>, vector<8x1xf32>
      %155 = arith.mulf %150, %154 : vector<8x1xf32>
      %cst_120 = arith.constant dense<0.000000e+00> : vector<8xf32>
      %156 = vector.multi_reduction <add>, %153, %cst_120 [1] : vector<8x8xf32> to vector<8xf32>
      %157 = vector.shape_cast %156 : vector<8xf32> to vector<8x1xf32>
      %158 = arith.addf %155, %157 : vector<8x1xf32>
      %c0_121 = arith.constant 0 : index
      %c0_122 = arith.constant 0 : index
      %159 = vector.load %arg18[%c0_121, %c0_122] : memref<8x1xf32, #tpu.memory_space<vmem>>, vector<8x1xf32>
      tpu.vector_store %arg18[%c0_121, %c0_122], %158 {strides = array<i32>} : memref<8x1xf32, #tpu.memory_space<vmem>>, vector<8x1xf32>,
      %c0_123 = arith.constant 0 : index
      %c0_124 = arith.constant 0 : index
      %160 = vector.load %arg19[%c0_123, %c0_124] : memref<8x8xf32, #tpu.memory_space<vmem>>, vector<8x8xf32>
      %161 = vector.broadcast %150 : vector<8x1xf32> to vector<8x8xf32>
      %162 = arith.mulf %161, %160 : vector<8x8xf32>
      %cst_125 = arith.constant dense<0.000000e+00> : vector<8x8xf32>
      %163 = tpu.matmul %153, %134, %cst_125 {dimension_numbers = #tpu.dot_dimension_numbers<[1], [0], [0], [1], [0, 0, 1, 1], [], []>} : vector<8x8xf32>, vector<8x8xf32>, vector<8x8xf32> -> vector<8x8xf32>
      %164 = arith.addf %162, %163 : vector<8x8xf32>
      %c0_126 = arith.constant 0 : index
      %c0_127 = arith.constant 0 : index
      %165 = vector.load %arg19[%c0_126, %c0_127] : memref<8x8xf32, #tpu.memory_space<vmem>>, vector<8x8xf32>
      tpu.vector_store %arg19[%c0_126, %c0_127], %164 {strides = array<i32>} : memref<8x8xf32, #tpu.memory_space<vmem>>, vector<8x8xf32>,
      %c0_128 = arith.constant 0 : index
      %c0_129 = arith.constant 0 : index
      %166 = vector.load %arg17[%c0_128, %c0_129] : memref<8x1xf32, #tpu.memory_space<vmem>>, vector<8x1xf32>
      tpu.vector_store %arg17[%c0_128, %c0_129], %148 {strides = array<i32>} : memref<8x1xf32, #tpu.memory_space<vmem>>, vector<8x1xf32>,
    } else {
    }
    %c1_i32_98 = arith.constant 1 : i32
    %c0_99 = arith.constant 0 : index
    %c0_100 = arith.constant 0 : index
    %115 = vector.load %arg19[%c0_99, %c0_100] : memref<8x8xf32, #tpu.memory_space<vmem>>, vector<8x8xf32>
    %c0_101 = arith.constant 0 : index
    %c0_102 = arith.constant 0 : index
    %116 = vector.load %arg18[%c0_101, %c0_102] : memref<8x1xf32, #tpu.memory_space<vmem>>, vector<8x1xf32>
    %117 = tpu.reciprocal %116 : vector<8x1xf32> -> vector<8x1xf32>
    %118 = vector.broadcast %117 : vector<8x1xf32> to vector<8x8xf32>
    %119 = arith.mulf %115, %118 : vector<8x8xf32>
    %120 = arith.index_cast %101 : i32 to index
    %c24_103 = arith.constant 24 : index
    %121 = vector.load %arg15[%120, %c24_103] : memref<8x32xf32, #tpu.memory_space<vmem>>, vector<8x8xf32>
    tpu.vector_store %arg15[%120, %c24_103], %119 {strides = array<i32>} : memref<8x32xf32, #tpu.memory_space<vmem>>, vector<8x8xf32>,
    %c1_i32_104 = arith.constant 1 : i32
    %122 = arith.index_cast %arg1 : i32 to index
    %c0_105 = arith.constant 0 : index
    %c0_106 = arith.constant 0 : index
    %123 = vector.load %arg9[%122, %c0_105, %c0_106] : memref<1x32x32xf32, #tpu.memory_space<vmem>>, vector<1x32x32xf32>
    %124 = vector.shape_cast %123 : vector<1x32x32xf32> to vector<32x32xf32>
    %c0_i32_107 = arith.constant 0 : i32
    %125 = arith.cmpi eq, %arg1, %c0_i32_107 : i32
    %126 = arith.extui %125 : i1 to i32
    %c0_i32_108 = arith.constant 0 : i32
    %127 = arith.cmpi ne, %126, %c0_i32_108 : i32
    scf.if %127 {
      %c0_i32_111 = arith.constant 0 : i32
      %c8_i32_112 = arith.constant 8 : i32
      %131 = arith.muli %c0_i32_111, %c8_i32_112 : i32
      %132 = tpu.assume_multiple %131, 8 : i32
      %133 = arith.index_cast %132 : i32 to index
      %c0_113 = arith.constant 0 : index
      %134 = vector.load %arg15[%133, %c0_113] : memref<8x32xf32, #tpu.memory_space<vmem>>, vector<8x32xf32>
      %cst_114 = arith.constant dense<0.000000e+00> : vector<8x32xf32>
      %135 = tpu.matmul %134, %124, %cst_114 {dimension_numbers = #tpu.dot_dimension_numbers<[1], [0], [0], [1], [0, 0, 1, 1], [], []>} : vector<8x32xf32>, vector<32x32xf32>, vector<8x32xf32> -> vector<8x32xf32>
      %136 = arith.index_cast %132 : i32 to index
      %c0_115 = arith.constant 0 : index
      %137 = vector.load %arg16[%136, %c0_115] : memref<8x32xf32, #tpu.memory_space<vmem>>, vector<8x32xf32>
      tpu.vector_store %arg16[%136, %c0_115], %135 {strides = array<i32>} : memref<8x32xf32, #tpu.memory_space<vmem>>, vector<8x32xf32>,
      %c1_i32_116 = arith.constant 1 : i32
    } else {
    }
    %c0_i32_109 = arith.constant 0 : i32
    %128 = arith.cmpi eq, %arg1, %c0_i32_109 : i32
    %129 = arith.extui %128 : i1 to i32
    %c0_i32_110 = arith.constant 0 : i32
    %130 = arith.cmpi ne, %129, %c0_i32_110 : i32
    scf.if %130 {
      %c0_111 = arith.constant 0 : index
      %c0_112 = arith.constant 0 : index
      %131 = vector.load %arg16[%c0_111, %c0_112] : memref<8x32xf32, #tpu.memory_space<vmem>>, vector<8x32xf32>
      %c0_113 = arith.constant 0 : index
      %c0_114 = arith.constant 0 : index
      %132 = vector.load %arg10[%c0_113, %c0_114] : memref<1x32xf32, #tpu.memory_space<vmem>>, vector<1x32xf32>
      %133 = vector.broadcast %132 : vector<1x32xf32> to vector<8x32xf32>
      %134 = arith.addf %131, %133 : vector<8x32xf32>
      %c0_115 = arith.constant 0 : index
      %c0_116 = arith.constant 0 : index
      %c0_117 = arith.constant 0 : index
      %135 = vector.load %arg11[%c0_115, %c0_116, %c0_117] : memref<1x8x32xf32, #tpu.memory_space<vmem>>, vector<1x8x32xf32>
      %136 = vector.shape_cast %135 : vector<1x8x32xf32> to vector<8x32xf32>
      %137 = vector.shape_cast %134 : vector<8x32xf32> to vector<1x8x32xf32>
      tpu.vector_store %arg11[%c0_115, %c0_116, %c0_117], %137 {strides = array<i32>} : memref<1x8x32xf32, #tpu.memory_space<vmem>>, vector<1x8x32xf32>,
    } else {
    }
    return
  }
  func.func @transform_0(%arg0: i32, %arg1: i32) -> (i32, i32, i32) {
    %c0_i32 = arith.constant 0 : i32
    %c0_i32_0 = arith.constant 0 : i32
    %c0_i32_1 = arith.constant 0 : i32
    return %arg0, %c0_i32, %c0_i32_0 : i32, i32, i32
  }
  func.func @transform_1(%arg0: i32, %arg1: i32) -> (i32, i32, i32) {
    %c0_i32 = arith.constant 0 : i32
    %c0_i32_0 = arith.constant 0 : i32
    %c0_i32_1 = arith.constant 0 : i32
    %c0_i32_2 = arith.constant 0 : i32
    return %c0_i32, %c0_i32_0, %c0_i32_1 : i32, i32, i32
  }
  func.func @transform_2(%arg0: i32, %arg1: i32) -> (i32, i32, i32) {
    %c0_i32 = arith.constant 0 : i32
    %c0_i32_0 = arith.constant 0 : i32
    %c0_i32_1 = arith.constant 0 : i32
    %c0_i32_2 = arith.constant 0 : i32
    return %c0_i32, %c0_i32_0, %c0_i32_1 : i32, i32, i32
  }
  func.func @transform_3(%arg0: i32, %arg1: i32) -> (i32, i32, i32) {
    %c0_i32 = arith.constant 0 : i32
    %c0_i32_0 = arith.constant 0 : i32
    %c0_i32_1 = arith.constant 0 : i32
    %c0_i32_2 = arith.constant 0 : i32
    return %c0_i32, %c0_i32_0, %c0_i32_1 : i32, i32, i32
  }
  func.func @transform_4(%arg0: i32, %arg1: i32) -> (i32, i32, i32) {
    %c0_i32 = arith.constant 0 : i32
    %c0_i32_0 = arith.constant 0 : i32
    %c0_i32_1 = arith.constant 0 : i32
    %c0_i32_2 = arith.constant 0 : i32
    return %c0_i32, %c0_i32_0, %c0_i32_1 : i32, i32, i32
  }
  func.func @transform_5(%arg0: i32, %arg1: i32) -> (i32, i32, i32) {
    %c0_i32 = arith.constant 0 : i32
    %c0_i32_0 = arith.constant 0 : i32
    %c0_i32_1 = arith.constant 0 : i32
    %c0_i32_2 = arith.constant 0 : i32
    return %c0_i32, %c0_i32_0, %c0_i32_1 : i32, i32, i32
  }
  func.func @transform_6(%arg0: i32, %arg1: i32) -> (i32, i32, i32) {
    %c0_i32 = arith.constant 0 : i32
    %c0_i32_0 = arith.constant 0 : i32
    %c0_i32_1 = arith.constant 0 : i32
    %c0_i32_2 = arith.constant 0 : i32
    return %c0_i32, %c0_i32_0, %c0_i32_1 : i32, i32, i32
  }
  func.func @transform_7(%arg0: i32, %arg1: i32) -> (i32, i32, i32) {
    %c0_i32 = arith.constant 0 : i32
    %c0_i32_0 = arith.constant 0 : i32
    %c0_i32_1 = arith.constant 0 : i32
    %c0_i32_2 = arith.constant 0 : i32
    return %c0_i32, %c0_i32_0, %c0_i32_1 : i32, i32, i32
  }
  func.func @transform_8(%arg0: i32, %arg1: i32) -> (i32, i32) {
    %c0_i32 = arith.constant 0 : i32
    %c0_i32_0 = arith.constant 0 : i32
    %c0_i32_1 = arith.constant 0 : i32
    return %c0_i32, %c0_i32_0 : i32, i32
  }
  func.func @transform_9(%arg0: i32, %arg1: i32) -> (i32, i32, i32) {
    %c0_i32 = arith.constant 0 : i32
    %c0_i32_0 = arith.constant 0 : i32
    %c0_i32_1 = arith.constant 0 : i32
    return %arg0, %c0_i32, %c0_i32_0 : i32, i32, i32
  }
}

</mosaic_0001>

<llo_original>
// kernel: tpu_custom_call.1
$region0: #{tpu_custom_call.1}
  #allocation0 [shape = 'u32[]', space=smem, size = 0x4, offset = 0x4, fixed_abs, tag = 'smem constant byte address 0x4 - core index']
  #allocation1 [shape = 'u32[144,128]{1,0:T(1,128)}', space=vmem, size = 0x12000, scoped, tag = 'internal scratch']
  #allocation2 [shape = 'f32[8,32]{1,0:T(8,128)}', space=vmem, size = 0x1000, scoped, tag = 'scratch operand']
  #allocation3 [shape = 'f32[8,32]{1,0:T(8,128)}', space=vmem, size = 0x1000, scoped, tag = 'scratch operand']
  #allocation4 [shape = 'f32[8,32]{1,0:T(8,128)}', space=vmem, size = 0x1000, scoped, tag = 'scratch operand']
  #allocation5 [shape = 'f32[8,32]{1,0:T(8,128)}', space=vmem, size = 0x1000, scoped, tag = 'scratch operand']
  #allocation6 [shape = 'f32[8,32]{1,0:T(8,128)}', space=vmem, size = 0x1000, scoped, tag = 'scratch operand']
  #allocation7 [shape = 'f32[8,1]{1,0:T(8,128)}', space=vmem, size = 0x1000, scoped, tag = 'scratch operand']
  #allocation8 [shape = 'f32[8,1]{1,0:T(8,128)}', space=vmem, size = 0x1000, scoped, tag = 'scratch operand']
  #allocation9 [shape = 'f32[8,8]{1,0:T(8,128)}', space=vmem, size = 0x1000, scoped, tag = 'scratch operand']
  %s0 = inlined_call_operand.hbm [shape: f32[2,8,32], index: 0, kind: input, shape index: {}]
  %s1 = inlined_call_operand.hbm [shape: f32[1,32,32], index: 1, kind: input, shape index: {}]
  %s2 = inlined_call_operand.hbm [shape: f32[1,32,32], index: 2, kind: input, shape index: {}]
  %s3 = inlined_call_operand.hbm [shape: f32[1,32,32], index: 3, kind: input, shape index: {}]
  %s4 = inlined_call_operand.vmem [shape: f32[1,1,32], index: 4, kind: input, shape index: {}]
  %s5 = inlined_call_operand.vmem [shape: f32[1,1,32], index: 5, kind: input, shape index: {}]
  %s6 = inlined_call_operand.vmem [shape: f32[1,1,32], index: 6, kind: input, shape index: {}]
  %s7 = inlined_call_operand.hbm [shape: f32[1,32,32], index: 7, kind: input, shape index: {}]
  %s8 = inlined_call_operand.vmem [shape: f32[1,32], index: 8, kind: input, shape index: {}]
  %s9 = inlined_call_operand.hbm [shape: f32[2,8,32], index: 9, kind: output, shape index: {}]
  %s10 = sld [smem:[#allocation0]]
  $region93: #{tpu_custom_call.1} parent=0
    _
  %s12 = ssub.s32 1, %s10
  %s13 = scalar_select 0, %s12, %s10
  $region1: #{tpu_custom_call.1} parent=0
    #allocation10 [shape = 'u8[8192]{0}', space=vmem, size = 0x2000, scoped, tag = 'input window, operand 0']
    #allocation11 [shape = 's32[2]{0}', space=sflag, size = 0x8, scoped, tag = 'scoped memory for tpu_custom_call.1']
    #allocation12 [shape = 's32[2]{0}', space=sflag, size = 0x8, scoped, tag = 'scoped memory for tpu_custom_call.1']
    #allocation13 [shape = 'u8[16384]{0}', space=vmem, size = 0x4000, scoped, tag = 'input window, operand 1, single buffered']
    #allocation14 [shape = 's32[1]{0}', space=sflag, size = 0x4, scoped, tag = 'scoped memory for tpu_custom_call.1']
    #allocation15 [shape = 'u8[16384]{0}', space=vmem, size = 0x4000, scoped, tag = 'input window, operand 2, single buffered']
    #allocation16 [shape = 'u8[16384]{0}', space=vmem, size = 0x4000, scoped, tag = 'input window, operand 3, single buffered']
    #allocation17 [shape = 's32[1]{0}', space=sflag, size = 0x4, scoped, tag = 'scoped memory for tpu_custom_call.1']
    #allocation18 [shape = 'u8[16384]{0}', space=vmem, size = 0x4000, scoped, tag = 'input window, operand 7, single buffered']
    #allocation19 [shape = 'u8[8192]{0}', space=vmem, size = 0x2000, scoped, tag = 'output window, operand 0']
    %14 = vsyncpa [#allocation11], 0
    %s15 = scalar_lea.sflag [#allocation11], 1
    %16 = vsyncpa %s15, 0
    %17 = vsyncpa [#allocation14], 0
    %18 = vsyncpa [#allocation17], 0
    %19 = vsyncpa [#allocation12], 0
    %s20 = scalar_lea.sflag [#allocation12], 1
    %21 = vsyncpa %s20, 0
    loop: start=0, step=1, limit=4
    $region2: #{tpu_custom_call.1} parent=1 // loop_pre_header
      _
    $region3: #{tpu_custom_call.1} parent=1 // loop_header
      %s23 = sphi 0, %s27
      %p24 = scmp.ge.s32.totalorder %s23, 4
      %s30 = sphi 0, %s42
      %s31 = sphi 0, %s38
      %s32 = sphi 0, %s30
      %s33 = sphi 0, %s31
      %s34 = sphi 0, %s32
      %s35 = sphi 0, %s33
      %s45 = sphi 0, %s47
      %s48 = sphi 0, %s45
      %s49 = sphi 0, %s48
      %s65 = sphi 0, %s49
      %s69 = sphi 0, %s69
      %s71 = sphi 0, %s69
      %s72 = sphi 0, %s71
      %s86 = sphi 0, %s72
      %s90 = sphi 0, %s90
      %s92 = sphi 0, %s90
      %s93 = sphi 0, %s92
      %s107 = sphi 0, %s93
      %s111 = sphi 0, %s111
      %s113 = sphi 0, %s111
      %s114 = sphi 0, %s113
      %s128 = sphi 0, %s114
      %s132 = sphi 0, %s132
      %s134 = sphi 0, %s132
      %s135 = sphi 0, %s134
      %s149 = sphi 0, %s135
      %s153 = sphi 0, %s153
      %s155 = sphi 0, %s153
      %s156 = sphi 0, %s155
      %s170 = sphi 0, %s156
      %s174 = sphi 0, %s174
      %s176 = sphi 0, %s174
      %s177 = sphi 0, %s176
      %s191 = sphi 0, %s177
      %s195 = sphi 0, %s195
      %s197 = sphi 0, %s195
      %s198 = sphi 0, %s197
      %s212 = sphi 0, %s198
      %s216 = sphi 0, %s216
      %s218 = sphi 0, %s216
      %s219 = sphi 0, %s218
      %s233 = sphi 0, %s219
      %s239 = sphi 0, %s241
      %s242 = sphi 0, %s239
      %s243 = sphi 0, %s242
      %s259 = sphi 0, %s243
    $region4: #{tpu_custom_call.1} parent=1 // loop_header_branch
      %26 = sbr.rel (%p24) target = $region8
    $region5: #{tpu_custom_call.1} parent=1 // loop_body
      %s28 = ssub.s32 %s23, 1
      %s29 = ssub.s32 %s23, 2
      %s36 = sadd.s32 1, %s31
      %p37 = scmp.ge.s32.totalorder %s36, 1
      %s38 = scalar_select %p37, 0, %s36
      %s39 = sadd.s32 1, %s30
      %s40 = scalar_select %p37, %s39, %s30
      %p41 = scmp.ge.s32.totalorder %s40, 2
      %s42 = scalar_select %p41, 0, %s40
      %s43 = ssub.s32 %s30, %s42
      %p44 = scmp.eq.s32.totalorder %s43, 0
      %s46 = sadd.s32 %s45, 1
      %s47 = scalar_select %p44, %s45, %s46
      %p50 = pneg %p44
      %p51 = scmp.eq.s32.totalorder %s23, 1
      %p52 = por %p50, %p51
      %p53 = scmp.ne.s32.totalorder %s45, %s48
      %p54 = scmp.eq.s32.totalorder %s23, 0
      %p55 = por %p53, %p54
      %p56 = scmp.ne.s32.totalorder %s45, %s48
      %p57 = scmp.eq.s32.totalorder %s28, 1
      %p58 = por %p56, %p57
      %p59 = scmp.ne.s32.totalorder %s48, %s49
      %p60 = scmp.eq.s32.totalorder %s28, 0
      %p61 = por %p59, %p60
      %p62 = scmp.ne.s32.totalorder %s48, %s49
      %p63 = scmp.eq.s32.totalorder %s29, 1
      %p64 = por %p62, %p63
      %p66 = scmp.ne.s32.totalorder %s49, %s65
      %p67 = scmp.eq.s32.totalorder %s29, 0
      %p68 = por %p66, %p67
      %s70 = sadd.s32 %s69, 1
      %p73 = scmp.eq.s32.totalorder %s23, 1
      %p74 = scmp.ne.s32.totalorder %s69, %s71
      %p75 = scmp.eq.s32.totalorder %s23, 0
      %p76 = por %p74, %p75
      %p77 = scmp.ne.s32.totalorder %s69, %s71
      %p78 = scmp.eq.s32.totalorder %s28, 1
      %p79 = por %p77, %p78
      %p80 = scmp.ne.s32.totalorder %s71, %s72
      %p81 = scmp.eq.s32.totalorder %s28, 0
      %p82 = por %p80, %p81
      %p83 = scmp.ne.s32.totalorder %s71, %s72
      %p84 = scmp.eq.s32.totalorder %s29, 1
      %p85 = por %p83, %p84
      %p87 = scmp.ne.s32.totalorder %s72, %s86
      %p88 = scmp.eq.s32.totalorder %s29, 0
      %p89 = por %p87, %p88
      %s91 = sadd.s32 %s90, 1
      %p94 = scmp.eq.s32.totalorder %s23, 1
      %p95 = scmp.ne.s32.totalorder %s90, %s92
      %p96 = scmp.eq.s32.totalorder %s23, 0
      %p97 = por %p95, %p96
      %p98 = scmp.ne.s32.totalorder %s90, %s92
      %p99 = scmp.eq.s32.totalorder %s28, 1
      %p100 = por %p98, %p99
      %p101 = scmp.ne.s32.totalorder %s92, %s93
      %p102 = scmp.eq.s32.totalorder %s28, 0
      %p103 = por %p101, %p102
      %p104 = scmp.ne.s32.totalorder %s92, %s93
      %p105 = scmp.eq.s32.totalorder %s29, 1
      %p106 = por %p104, %p105
      %p108 = scmp.ne.s32.totalorder %s93, %s107
      %p109 = scmp.eq.s32.totalorder %s29, 0
      %p110 = por %p108, %p109
      %s112 = sadd.s32 %s111, 1
      %p115 = scmp.eq.s32.totalorder %s23, 1
      %p116 = scmp.ne.s32.totalorder %s111, %s113
      %p117 = scmp.eq.s32.totalorder %s23, 0
      %p118 = por %p116, %p117
      %p119 = scmp.ne.s32.totalorder %s111, %s113
      %p120 = scmp.eq.s32.totalorder %s28, 1
      %p121 = por %p119, %p120
      %p122 = scmp.ne.s32.totalorder %s113, %s114
      %p123 = scmp.eq.s32.totalorder %s28, 0
      %p124 = por %p122, %p123
      %p125 = scmp.ne.s32.totalorder %s113, %s114
      %p126 = scmp.eq.s32.totalorder %s29, 1
      %p127 = por %p125, %p126
      %p129 = scmp.ne.s32.totalorder %s114, %s128
      %p130 = scmp.eq.s32.totalorder %s29, 0
      %p131 = por %p129, %p130
      %s133 = sadd.s32 %s132, 1
      %p136 = scmp.eq.s32.totalorder %s23, 1
      %p137 = scmp.ne.s32.totalorder %s132, %s134
      %p138 = scmp.eq.s32.totalorder %s23, 0
      %p139 = por %p137, %p138
      %p140 = scmp.ne.s32.totalorder %s132, %s134
      %p141 = scmp.eq.s32.totalorder %s28, 1
      %p142 = por %p140, %p141
      %p143 = scmp.ne.s32.totalorder %s134, %s135
      %p144 = scmp.eq.s32.totalorder %s28, 0
      %p145 = por %p143, %p144
      %p146 = scmp.ne.s32.totalorder %s134, %s135
      %p147 = scmp.eq.s32.totalorder %s29, 1
      %p148 = por %p146, %p147
      %p150 = scmp.ne.s32.totalorder %s135, %s149
      %p151 = scmp.eq.s32.totalorder %s29, 0
      %p152 = por %p150, %p151
      %s154 = sadd.s32 %s153, 1
      %p157 = scmp.eq.s32.totalorder %s23, 1
      %p158 = scmp.ne.s32.totalorder %s153, %s155
      %p159 = scmp.eq.s32.totalorder %s23, 0
      %p160 = por %p158, %p159
      %p161 = scmp.ne.s32.totalorder %s153, %s155
      %p162 = scmp.eq.s32.totalorder %s28, 1
      %p163 = por %p161, %p162
      %p164 = scmp.ne.s32.totalorder %s155, %s156
      %p165 = scmp.eq.s32.totalorder %s28, 0
      %p166 = por %p164, %p165
      %p167 = scmp.ne.s32.totalorder %s155, %s156
      %p168 = scmp.eq.s32.totalorder %s29, 1
      %p169 = por %p167, %p168
      %p171 = scmp.ne.s32.totalorder %s156, %s170
      %p172 = scmp.eq.s32.totalorder %s29, 0
      %p173 = por %p171, %p172
      %s175 = sadd.s32 %s174, 1
      %p178 = scmp.eq.s32.totalorder %s23, 1
      %p179 = scmp.ne.s32.totalorder %s174, %s176
      %p180 = scmp.eq.s32.totalorder %s23, 0
      %p181 = por %p179, %p180
      %p182 = scmp.ne.s32.totalorder %s174, %s176
      %p183 = scmp.eq.s32.totalorder %s28, 1
      %p184 = por %p182, %p183
      %p185 = scmp.ne.s32.totalorder %s176, %s177
      %p186 = scmp.eq.s32.totalorder %s28, 0
      %p187 = por %p185, %p186
      %p188 = scmp.ne.s32.totalorder %s176, %s177
      %p189 = scmp.eq.s32.totalorder %s29, 1
      %p190 = por %p188, %p189
      %p192 = scmp.ne.s32.totalorder %s177, %s191
      %p193 = scmp.eq.s32.totalorder %s29, 0
      %p194 = por %p192, %p193
      %s196 = sadd.s32 %s195, 1
      %p199 = scmp.eq.s32.totalorder %s23, 1
      %p200 = scmp.ne.s32.totalorder %s195, %s197
      %p201 = scmp.eq.s32.totalorder %s23, 0
      %p202 = por %p200, %p201
      %p203 = scmp.ne.s32.totalorder %s195, %s197
      %p204 = scmp.eq.s32.totalorder %s28, 1
      %p205 = por %p203, %p204
      %p206 = scmp.ne.s32.totalorder %s197, %s198
      %p207 = scmp.eq.s32.totalorder %s28, 0
      %p208 = por %p206, %p207
      %p209 = scmp.ne.s32.totalorder %s197, %s198
      %p210 = scmp.eq.s32.totalorder %s29, 1
      %p211 = por %p209, %p210
      %p213 = scmp.ne.s32.totalorder %s198, %s212
      %p214 = scmp.eq.s32.totalorder %s29, 0
      %p215 = por %p213, %p214
      %s217 = sadd.s32 %s216, 1
      %p220 = scmp.eq.s32.totalorder %s23, 1
      %p221 = scmp.ne.s32.totalorder %s216, %s218
      %p222 = scmp.eq.s32.totalorder %s23, 0
      %p223 = por %p221, %p222
      %p224 = scmp.ne.s32.totalorder %s216, %s218
      %p225 = scmp.eq.s32.totalorder %s28, 1
      %p226 = por %p224, %p225
      %p227 = scmp.ne.s32.totalorder %s218, %s219
      %p228 = scmp.eq.s32.totalorder %s28, 0
      %p229 = por %p227, %p228
      %p230 = scmp.ne.s32.totalorder %s218, %s219
      %p231 = scmp.eq.s32.totalorder %s29, 1
      %p232 = por %p230, %p231
      %p234 = scmp.ne.s32.totalorder %s219, %s233
      %p235 = scmp.eq.s32.totalorder %s29, 0
      %p236 = por %p234, %p235
      %s237 = ssub.s32 %s30, %s42
      %p238 = scmp.eq.s32.totalorder %s237, 0
      %s240 = sadd.s32 %s239, 1
      %s241 = scalar_select %p238, %s239, %s240
      %p244 = pneg %p238
      %p245 = scmp.eq.s32.totalorder %s23, 1
      %p246 = por %p244, %p245
      %p247 = scmp.ne.s32.totalorder %s239, %s242
      %p248 = scmp.eq.s32.totalorder %s23, 0
      %p249 = por %p247, %p248
      %p250 = scmp.ne.s32.totalorder %s239, %s242
      %p251 = scmp.eq.s32.totalorder %s28, 1
      %p252 = por %p250, %p251
      %p253 = scmp.ne.s32.totalorder %s242, %s243
      %p254 = scmp.eq.s32.totalorder %s28, 0
      %p255 = por %p253, %p254
      %p256 = scmp.ne.s32.totalorder %s242, %s243
      %p257 = scmp.eq.s32.totalorder %s29, 1
      %p258 = por %p256, %p257
      %p260 = scmp.ne.s32.totalorder %s243, %s259
      %p261 = scmp.eq.s32.totalorder %s29, 0
      %p262 = por %p260, %p261
      %p263 = scmp.le.s32.totalorder 1, %s23
      %p264 = scmp.lt.s32.totalorder %s23, 3
      %p265 = pnand %p263, %p264
      %p266 = pneg %p265
      // Predicated region
      $region9: #{tpu_custom_call.1} parent=5 // pred_check
        _
      $region10: #{tpu_custom_call.1} parent=5 // pred_check_branch
        %268 = sbr.rel (%p265) target = $region12
      $region11: #{tpu_custom_call.1} parent=5 // pred_region
        %s269 = ssub.s32 %s23, 1
        // Predicated region
        $region13: #{tpu_custom_call.1} parent=11 // pred_check
          %p270 = pneg %p82
        $region14: #{tpu_custom_call.1} parent=11 // pred_check_branch
          %272 = sbr.rel (%p270) target = $region16
        $region15: #{tpu_custom_call.1} parent=11 // pred_region
          %s274 = ssub.s32 512, 512
          %275 = vsyncadd [#allocation14], %s274
          %s276 = sshll.u32 [#allocation13], 4
          %s277 = int_to_ptr.vmem [resolvable:$true] %s276
          %282 = dma.hbm_to_vmem [thread:$0]  %s1, 512, %s277, [#allocation14], 128, 128, 8
        $region16: #{tpu_custom_call.1} parent=11 // pred_fallthru
          _
        // Predicated region
        $region17: #{tpu_custom_call.1} parent=11 // pred_check
          %p283 = pneg %p103
        $region18: #{tpu_custom_call.1} parent=11 // pred_check_branch
          %285 = sbr.rel (%p283) target = $region20
        $region19: #{tpu_custom_call.1} parent=11 // pred_region
          %s287 = ssub.s32 512, 512
          %288 = vsyncadd [#allocation14], %s287
          %s289 = sshll.u32 [#allocation15], 4
          %s290 = int_to_ptr.vmem [resolvable:$true] %s289
          %295 = dma.hbm_to_vmem [thread:$0]  %s2, 512, %s290, [#allocation14], 128, 128, 8
        $region20: #{tpu_custom_call.1} parent=11 // pred_fallthru
          _
        // Predicated region
        $region21: #{tpu_custom_call.1} parent=11 // pred_check
          %p296 = pneg %p124
        $region22: #{tpu_custom_call.1} parent=11 // pred_check_branch
          %298 = sbr.rel (%p296) target = $region24
        $region23: #{tpu_custom_call.1} parent=11 // pred_region
          %s300 = ssub.s32 512, 512
          %301 = vsyncadd [#allocation17], %s300
          %s302 = sshll.u32 [#allocation16], 4
          %s303 = int_to_ptr.vmem [resolvable:$true] %s302
          %308 = dma.hbm_to_vmem [thread:$0]  %s3, 512, %s303, [#allocation17], 128, 128, 8
        $region24: #{tpu_custom_call.1} parent=11 // pred_fallthru
          _
        // Predicated region
        $region25: #{tpu_custom_call.1} parent=11 // pred_check
          %p309 = pneg %p145
        $region26: #{tpu_custom_call.1} parent=11 // pred_check_branch
          %311 = sbr.rel (%p309) target = $region28
        $region27: #{tpu_custom_call.1} parent=11 // pred_region
          _
        $region28: #{tpu_custom_call.1} parent=11 // pred_fallthru
          _
        // Predicated region
        $region29: #{tpu_custom_call.1} parent=11 // pred_check
          %p312 = pneg %p166
        $region30: #{tpu_custom_call.1} parent=11 // pred_check_branch
          %314 = sbr.rel (%p312) target = $region32
        $region31: #{tpu_custom_call.1} parent=11 // pred_region
          _
        $region32: #{tpu_custom_call.1} parent=11 // pred_fallthru
          _
        // Predicated region
        $region33: #{tpu_custom_call.1} parent=11 // pred_check
          %p315 = pneg %p187
        $region34: #{tpu_custom_call.1} parent=11 // pred_check_branch
          %317 = sbr.rel (%p315) target = $region36
        $region35: #{tpu_custom_call.1} parent=11 // pred_region
          _
        $region36: #{tpu_custom_call.1} parent=11 // pred_fallthru
          _
        // Predicated region
        $region37: #{tpu_custom_call.1} parent=11 // pred_check
          %p318 = pneg %p208
        $region38: #{tpu_custom_call.1} parent=11 // pred_check_branch
          %320 = sbr.rel (%p318) target = $region40
        $region39: #{tpu_custom_call.1} parent=11 // pred_region
          %s322 = ssub.s32 512, 512
          %323 = vsyncadd [#allocation17], %s322
          %s324 = sshll.u32 [#allocation18], 4
          %s325 = int_to_ptr.vmem [resolvable:$true] %s324
          %330 = dma.hbm_to_vmem [thread:$0]  %s7, 512, %s325, [#allocation17], 128, 128, 8
        $region40: #{tpu_custom_call.1} parent=11 // pred_fallthru
          _
        // Predicated region
        $region41: #{tpu_custom_call.1} parent=11 // pred_check
          %p331 = pneg %p229
        $region42: #{tpu_custom_call.1} parent=11 // pred_check_branch
          %333 = sbr.rel (%p331) target = $region44
        $region43: #{tpu_custom_call.1} parent=11 // pred_region
          _
        $region44: #{tpu_custom_call.1} parent=11 // pred_fallthru
          _
      $region12: #{tpu_custom_call.1} parent=5 // pred_fallthru
        _
      %p334 = scmp.lt.s32.totalorder %s23, 2
      // Predicated region
      $region45: #{tpu_custom_call.1} parent=5 // pred_check
        %p335 = pneg %p334
      $region46: #{tpu_custom_call.1} parent=5 // pred_check_branch
        %337 = sbr.rel (%p335) target = $region48
      $region47: #{tpu_custom_call.1} parent=5 // pred_region
        // Predicated region
        $region49: #{tpu_custom_call.1} parent=47 // pred_check
          %p338 = pneg %p55
        $region50: #{tpu_custom_call.1} parent=47 // pred_check_branch
          %340 = sbr.rel (%p338) target = $region52
        $region51: #{tpu_custom_call.1} parent=47 // pred_region
          %s341 = sand.u32 %s45, 1
          %s342 = scalar_lea.sflag [#allocation11], %s341
          %s343 = sand.u32 %s45, 1
          %s344 = smul.addr %s343, 8
          %s345 = scalar_lea.vmem [#allocation10], %s344
          %s347 = ssub.s32 128, 128
          %348 = vsyncadd %s342, %s347
          %s349 = smul.addr %s30, 128
          %s350 = scalar_lea.hbm %s0, %s349
          %s352 = sshll.u32 %s345, 4
          %s353 = int_to_ptr.vmem [resolvable:$true] %s352
          %355 = dma.hbm_to_vmem [thread:$0]  %s350, 128, %s353, %s342
        $region52: #{tpu_custom_call.1} parent=47 // pred_fallthru
          _
      $region48: #{tpu_custom_call.1} parent=5 // pred_fallthru
        _
      %p356 = scmp.le.s32.totalorder 1, %s23
      %p357 = scmp.lt.s32.totalorder %s23, 3
      %p358 = pnand %p356, %p357
      %p359 = pneg %p358
      // Predicated region
      $region53: #{tpu_custom_call.1} parent=5 // pred_check
        _
      $region54: #{tpu_custom_call.1} parent=5 // pred_check_branch
        %361 = sbr.rel (%p358) target = $region56
      $region55: #{tpu_custom_call.1} parent=5 // pred_region
        %s362 = ssub.s32 %s23, 1
        %s363 = sand.u32 %s48, 1
        %s364 = scalar_lea.sflag [#allocation11], %s363
        %s365 = sand.u32 %s48, 1
        %s366 = smul.addr %s365, 8
        %s367 = scalar_lea.vmem [#allocation10], %s366
        // Predicated region
        $region57: #{tpu_custom_call.1} parent=55 // pred_check
          %p368 = pneg %p61
        $region58: #{tpu_custom_call.1} parent=55 // pred_check_branch
          %370 = sbr.rel (%p368) target = $region60
        $region59: #{tpu_custom_call.1} parent=55 // pred_region
          %371 = dma.done %s364, 128
        $region60: #{tpu_custom_call.1} parent=55 // pred_fallthru
          _
        // Predicated region
        $region61: #{tpu_custom_call.1} parent=55 // pred_check
          %p372 = pneg %p82
        $region62: #{tpu_custom_call.1} parent=55 // pred_check_branch
          %374 = sbr.rel (%p372) target = $region64
        $region63: #{tpu_custom_call.1} parent=55 // pred_region
          %375 = dma.done [#allocation14], 512
        $region64: #{tpu_custom_call.1} parent=55 // pred_fallthru
          _
        // Predicated region
        $region65: #{tpu_custom_call.1} parent=55 // pred_check
          %p376 = pneg %p103
        $region66: #{tpu_custom_call.1} parent=55 // pred_check_branch
          %378 = sbr.rel (%p376) target = $region68
        $region67: #{tpu_custom_call.1} parent=55 // pred_region
          %379 = dma.done [#allocation14], 512
        $region68: #{tpu_custom_call.1} parent=55 // pred_fallthru
          _
        // Predicated region
        $region69: #{tpu_custom_call.1} parent=55 // pred_check
          %p380 = pneg %p124
        $region70: #{tpu_custom_call.1} parent=55 // pred_check_branch
          %382 = sbr.rel (%p380) target = $region72
        $region71: #{tpu_custom_call.1} parent=55 // pred_region
          %383 = dma.done [#allocation17], 512
        $region72: #{tpu_custom_call.1} parent=55 // pred_fallthru
          _
        // Predicated region
        $region73: #{tpu_custom_call.1} parent=55 // pred_check
          %p384 = pneg %p208
        $region74: #{tpu_custom_call.1} parent=55 // pred_check_branch
          %386 = sbr.rel (%p384) target = $region76
        $region75: #{tpu_custom_call.1} parent=55 // pred_region
          %387 = dma.done [#allocation17], 512
        $region76: #{tpu_custom_call.1} parent=55 // pred_fallthru
          _
        %s388 = sand.u32 %s48, 1
        %s389 = scalar_lea.sflag [#allocation11], %s388
        %s390 = sand.u32 %s48, 1
        %s391 = smul.addr %s390, 8
        %s392 = scalar_lea.vmem [#allocation10], %s391
        %p393 = pneg %p61
        %p394 = pneg %p58
        %p395 = pneg %p82
        %p396 = pneg %p79
        %p397 = pneg %p103
        %p398 = pneg %p100
        %p399 = pneg %p124
        %p400 = pneg %p121
        %p401 = pneg %p145
        %p402 = pneg %p142
        %p403 = pneg %p166
        %p404 = pneg %p163
        %p405 = pneg %p187
        %p406 = pneg %p184
        %p407 = pneg %p208
        %p408 = pneg %p205
        %p409 = pneg %p229
        %p410 = pneg %p226
        %p411 = pneg %p255
        %p412 = pneg %p252
        %s413 = sand.u32 %s242, 1
        %s414 = scalar_lea.sflag [#allocation12], %s413
        %s415 = sand.u32 %s242, 1
        %s416 = smul.addr %s415, 8
        %s417 = scalar_lea.vmem [#allocation19], %s416
        %v418 = vld [vmem:[%s367] sm:$0xff]
        %s419 = smul.u32 %s33, 32
        %s420 = scalar_lea.vmem [#allocation13], %s419
        %v421 = vld [vmem:[%s420] sm:$0xff]
        %v422 = vld [vmem:[%s420 + $0x8] sm:$0xff]
        %v423 = vld [vmem:[%s420 + $0x10] sm:$0xff]
        %v424 = vld [vmem:[%s420 + $0x18] sm:$0xff]
        %s425 = scalar_lea.vmem %s4, %s33
        %v426 = vld [vmem:[%s425] sm:$0x1]
        %v428 = vlaneseq
        %v429 = vshrl.u32 %v428, 7
        %v430 = vsub.s32 0, %v429
        %v431 = vrot.slane %v426, %v430
        %vm433 = vcmask 261120
        %v435 = vsel %vm433, %v418, 0
        %437 = vmatprep.subr.mxu0 0.0
        %438 = vmatpush1.msra.mxu0 0.0
        %439 = vmatprep.subr.mxu0 0.0
        %440 = vmatpush1.msra.mxu0 0.0
        %441 = vmatprep.subr.mxu0 0.0
        %442 = vmatpush1.msra.mxu0 0.0
        %443 = vmatprep.subr.mxu0 0.0
        %444 = vmatpush1.msra.mxu0 0.0
        %445 = vmatprep.subr.mxu0 0.0
        %446 = vmatpush1.msra.mxu0 0.0
        %447 = vmatprep.subr.mxu0 0.0
        %448 = vmatpush1.msra.mxu0 0.0
        %449 = vmatprep.subr.mxu0 0.0
        %450 = vmatpush1.msra.mxu0 0.0
        %451 = vmatprep.subr.mxu0 0.0
        %452 = vmatpush1.msra.mxu0 0.0
        %453 = vmatprep.subr.mxu0 0.0
        %454 = vmatpush1.msra.mxu0 0.0
        %455 = vmatprep.subr.mxu0 0.0
        %456 = vmatpush1.msra.mxu0 0.0
        %457 = vmatprep.subr.mxu0 0.0
        %458 = vmatpush1.msra.mxu0 0.0
        %459 = vmatprep.subr.mxu0 0.0
        %460 = vmatpush1.msra.mxu0 0.0
        %461 = vmatprep.subr.mxu0 0.0
        %462 = vmatpush1.msra.mxu0 %v424
        %463 = vmatprep.subr.mxu0 0.0
        %464 = vmatpush1.msra.mxu0 %v423
        %465 = vmatprep.subr.mxu0 0.0
        %466 = vmatpush1.msra.mxu0 %v422
        %467 = vmatprep.subr.mxu0 0.0
        %468 = vmatpush1.msra.mxu0 %v421
        %469 = vmatprep.subr.mxu0 0.0
        %470 = vmatpush2.msra.mxu0 0.0
        %471 = vmatprep.subr.mxu0 0.0
        %472 = vmatpush2.msra.mxu0 0.0
        %473 = vmatprep.subr.mxu0 0.0
        %474 = vmatpush2.msra.mxu0 0.0
        %475 = vmatprep.subr.mxu0 0.0
        %476 = vmatpush2.msra.mxu0 0.0
        %477 = vmatprep.subr.mxu0 0.0
        %478 = vmatpush2.msra.mxu0 0.0
        %479 = vmatprep.subr.mxu0 0.0
        %480 = vmatpush2.msra.mxu0 0.0
        %481 = vmatprep.subr.mxu0 0.0
        %482 = vmatpush2.msra.mxu0 0.0
        %483 = vmatprep.subr.mxu0 0.0
        %484 = vmatpush2.msra.mxu0 0.0
        %485 = vmatprep.subr.mxu0 0.0
        %486 = vmatpush2.msra.mxu0 0.0
        %487 = vmatprep.subr.mxu0 0.0
        %488 = vmatpush2.msra.mxu0 0.0
        %489 = vmatprep.subr.mxu0 0.0
        %490 = vmatpush2.msra.mxu0 0.0
        %491 = vmatprep.subr.mxu0 0.0
        %492 = vmatpush2.msra.mxu0 0.0
        %493 = vmatprep.subr.mxu0 0.0
        %494 = vmatpush2.msra.mxu0 0.0
        %495 = vmatprep.subr.mxu0 0.0
        %496 = vmatpush2.msra.mxu0 0.0
        %497 = vmatprep.subr.mxu0 0.0
        %498 = vmatpush2.msra.mxu0 0.0
        %499 = vmatprep.subr.mxu0 0.0
        %500 = vmatpush2.msra.mxu0 0.0
        %501 = vmatprep.mubr.f32.mxu0 0.0
        %502 = vmatmul.mubr.f32.gmra.mxu0 %v435
        %v503 = vpop.f32.mrf.mxu0
        %v504 = vadd.f32 %v431, %v503
        %v505 = vpop.f32.mrf.mxu0
        %506 = vdwg.mxu0
        %s507 = scalar_lea.vmem [#allocation15], %s419
        %v508 = vld [vmem:[%s507] sm:$0xff]
        %v509 = vld [vmem:[%s507 + $0x8] sm:$0xff]
        %v510 = vld [vmem:[%s507 + $0x10] sm:$0xff]
        %v511 = vld [vmem:[%s507 + $0x18] sm:$0xff]
        %s512 = scalar_lea.vmem %s5, %s33
        %v513 = vld [vmem:[%s512] sm:$0x1]
        %v515 = vlaneseq
        %v516 = vshrl.u32 %v515, 7
        %v517 = vsub.s32 0, %v516
        %v518 = vrot.slane %v513, %v517
        %520 = vmatprep.subr.mxu0 0.0
        %521 = vmatpush1.msra.mxu0 0.0
        %522 = vmatprep.subr.mxu0 0.0
        %523 = vmatpush1.msra.mxu0 0.0
        %524 = vmatprep.subr.mxu0 0.0
        %525 = vmatpush1.msra.mxu0 0.0
        %526 = vmatprep.subr.mxu0 0.0
        %527 = vmatpush1.msra.mxu0 0.0
        %528 = vmatprep.subr.mxu0 0.0
        %529 = vmatpush1.msra.mxu0 0.0
        %530 = vmatprep.subr.mxu0 0.0
        %531 = vmatpush1.msra.mxu0 0.0
        %532 = vmatprep.subr.mxu0 0.0
        %533 = vmatpush1.msra.mxu0 0.0
        %534 = vmatprep.subr.mxu0 0.0
        %535 = vmatpush1.msra.mxu0 0.0
        %536 = vmatprep.subr.mxu0 0.0
        %537 = vmatpush1.msra.mxu0 0.0
        %538 = vmatprep.subr.mxu0 0.0
        %539 = vmatpush1.msra.mxu0 0.0
        %540 = vmatprep.subr.mxu0 0.0
        %541 = vmatpush1.msra.mxu0 0.0
        %542 = vmatprep.subr.mxu0 0.0
        %543 = vmatpush1.msra.mxu0 0.0
        %544 = vmatprep.subr.mxu0 0.0
        %545 = vmatpush1.msra.mxu0 %v511
        %546 = vmatprep.subr.mxu0 0.0
        %547 = vmatpush1.msra.mxu0 %v510
        %548 = vmatprep.subr.mxu0 0.0
        %549 = vmatpush1.msra.mxu0 %v509
        %550 = vmatprep.subr.mxu0 0.0
        %551 = vmatpush1.msra.mxu0 %v508
        %552 = vmatprep.subr.mxu0 0.0
        %553 = vmatpush2.msra.mxu0 0.0
        %554 = vmatprep.subr.mxu0 0.0
        %555 = vmatpush2.msra.mxu0 0.0
        %556 = vmatprep.subr.mxu0 0.0
        %557 = vmatpush2.msra.mxu0 0.0
        %558 = vmatprep.subr.mxu0 0.0
        %559 = vmatpush2.msra.mxu0 0.0
        %560 = vmatprep.subr.mxu0 0.0
        %561 = vmatpush2.msra.mxu0 0.0
        %562 = vmatprep.subr.mxu0 0.0
        %563 = vmatpush2.msra.mxu0 0.0
        %564 = vmatprep.subr.mxu0 0.0
        %565 = vmatpush2.msra.mxu0 0.0
        %566 = vmatprep.subr.mxu0 0.0
        %567 = vmatpush2.msra.mxu0 0.0
        %568 = vmatprep.subr.mxu0 0.0
        %569 = vmatpush2.msra.mxu0 0.0
        %570 = vmatprep.subr.mxu0 0.0
        %571 = vmatpush2.msra.mxu0 0.0
        %572 = vmatprep.subr.mxu0 0.0
        %573 = vmatpush2.msra.mxu0 0.0
        %574 = vmatprep.subr.mxu0 0.0
        %575 = vmatpush2.msra.mxu0 0.0
        %576 = vmatprep.subr.mxu0 0.0
        %577 = vmatpush2.msra.mxu0 0.0
        %578 = vmatprep.subr.mxu0 0.0
        %579 = vmatpush2.msra.mxu0 0.0
        %580 = vmatprep.subr.mxu0 0.0
        %581 = vmatpush2.msra.mxu0 0.0
        %582 = vmatprep.subr.mxu0 0.0
        %583 = vmatpush2.msra.mxu0 0.0
        %584 = vmatprep.mubr.f32.mxu0 0.0
        %585 = vmatmul.mubr.f32.gmra.mxu0 %v435
        %v586 = vpop.f32.mrf.mxu0
        %v587 = vadd.f32 %v518, %v586
        %v588 = vpop.f32.mrf.mxu0
        %589 = vdwg.mxu0
        %s590 = scalar_lea.vmem [#allocation16], %s419
        %v591 = vld [vmem:[%s590] sm:$0xff]
        %v592 = vld [vmem:[%s590 + $0x8] sm:$0xff]
        %v593 = vld [vmem:[%s590 + $0x10] sm:$0xff]
        %v594 = vld [vmem:[%s590 + $0x18] sm:$0xff]
        %s595 = scalar_lea.vmem %s6, %s33
        %v596 = vld [vmem:[%s595] sm:$0x1]
        %v598 = vlaneseq
        %v599 = vshrl.u32 %v598, 7
        %v600 = vsub.s32 0, %v599
        %v601 = vrot.slane %v596, %v600
        %603 = vmatprep.subr.mxu0 0.0
        %604 = vmatpush1.msra.mxu0 0.0
        %605 = vmatprep.subr.mxu0 0.0
        %606 = vmatpush1.msra.mxu0 0.0
        %607 = vmatprep.subr.mxu0 0.0
        %608 = vmatpush1.msra.mxu0 0.0
        %609 = vmatprep.subr.mxu0 0.0
        %610 = vmatpush1.msra.mxu0 0.0
        %611 = vmatprep.subr.mxu0 0.0
        %612 = vmatpush1.msra.mxu0 0.0
        %613 = vmatprep.subr.mxu0 0.0
        %614 = vmatpush1.msra.mxu0 0.0
        %615 = vmatprep.subr.mxu0 0.0
        %616 = vmatpush1.msra.mxu0 0.0
        %617 = vmatprep.subr.mxu0 0.0
        %618 = vmatpush1.msra.mxu0 0.0
        %619 = vmatprep.subr.mxu0 0.0
        %620 = vmatpush1.msra.mxu0 0.0
        %621 = vmatprep.subr.mxu0 0.0
        %622 = vmatpush1.msra.mxu0 0.0
        %623 = vmatprep.subr.mxu0 0.0
        %624 = vmatpush1.msra.mxu0 0.0
        %625 = vmatprep.subr.mxu0 0.0
        %626 = vmatpush1.msra.mxu0 0.0
        %627 = vmatprep.subr.mxu0 0.0
        %628 = vmatpush1.msra.mxu0 %v594
        %629 = vmatprep.subr.mxu0 0.0
        %630 = vmatpush1.msra.mxu0 %v593
        %631 = vmatprep.subr.mxu0 0.0
        %632 = vmatpush1.msra.mxu0 %v592
        %633 = vmatprep.subr.mxu0 0.0
        %634 = vmatpush1.msra.mxu0 %v591
        %635 = vmatprep.subr.mxu0 0.0
        %636 = vmatpush2.msra.mxu0 0.0
        %637 = vmatprep.subr.mxu0 0.0
        %638 = vmatpush2.msra.mxu0 0.0
        %639 = vmatprep.subr.mxu0 0.0
        %640 = vmatpush2.msra.mxu0 0.0
        %641 = vmatprep.subr.mxu0 0.0
        %642 = vmatpush2.msra.mxu0 0.0
        %643 = vmatprep.subr.mxu0 0.0
        %644 = vmatpush2.msra.mxu0 0.0
        %645 = vmatprep.subr.mxu0 0.0
        %646 = vmatpush2.msra.mxu0 0.0
        %647 = vmatprep.subr.mxu0 0.0
        %648 = vmatpush2.msra.mxu0 0.0
        %649 = vmatprep.subr.mxu0 0.0
        %650 = vmatpush2.msra.mxu0 0.0
        %651 = vmatprep.subr.mxu0 0.0
        %652 = vmatpush2.msra.mxu0 0.0
        %653 = vmatprep.subr.mxu0 0.0
        %654 = vmatpush2.msra.mxu0 0.0
        %655 = vmatprep.subr.mxu0 0.0
        %656 = vmatpush2.msra.mxu0 0.0
        %657 = vmatprep.subr.mxu0 0.0
        %658 = vmatpush2.msra.mxu0 0.0
        %659 = vmatprep.subr.mxu0 0.0
        %660 = vmatpush2.msra.mxu0 0.0
        %661 = vmatprep.subr.mxu0 0.0
        %662 = vmatpush2.msra.mxu0 0.0
        %663 = vmatprep.subr.mxu0 0.0
        %664 = vmatpush2.msra.mxu0 0.0
        %665 = vmatprep.subr.mxu0 0.0
        %666 = vmatpush2.msra.mxu0 0.0
        %667 = vmatprep.mubr.f32.mxu0 0.0
        %668 = vmatmul.mubr.f32.gmra.mxu0 %v435
        %v669 = vpop.f32.mrf.mxu0
        %v670 = vadd.f32 %v601, %v669
        %v671 = vpop.f32.mrf.mxu0
        %672 = vdwg.mxu0
        %673 = vst.msk [vmem:[#allocation2] sm:$0xff] %vm433, %v504
        %v674 = vmul.f32 %v587, 0.35355338
        %675 = vst.msk [vmem:[#allocation3] sm:$0xff] %vm433, %v674
        %676 = vst.msk [vmem:[#allocation4] sm:$0xff] %vm433, %v670
        %v677 = vld [vmem:[#allocation2] sm:$0xff]
        %vm678 = vcmask 7168
        %679 = vst.msk [vmem:[#allocation7] sm:$0xff] %vm678, -inf
        %680 = vst.msk [vmem:[#allocation8] sm:$0xff] %vm678, 0.0
        %vm681 = vcmask 64512
        %682 = vst.msk [vmem:[#allocation9] sm:$0xff] %vm681, 0.0
        %v683 = vld [vmem:[#allocation3] sm:$0xff]
        %v684 = vld [vmem:[#allocation4] sm:$0xff]
        %v686 = vsel %vm681, %v677, 0
        %v689 = vsel %vm681, %v683, 0
        %691 = vmatprep.subr.mxu0 0.0
        %692 = vmatpush1.xpose.msra.mxu0 0.0
        %693 = vmatprep.subr.mxu0 0.0
        %694 = vmatpush1.xpose.msra.mxu0 0.0
        %695 = vmatprep.subr.mxu0 0.0
        %696 = vmatpush1.xpose.msra.mxu0 0.0
        %697 = vmatprep.subr.mxu0 0.0
        %698 = vmatpush1.xpose.msra.mxu0 0.0
        %699 = vmatprep.subr.mxu0 0.0
        %700 = vmatpush1.xpose.msra.mxu0 0.0
        %701 = vmatprep.subr.mxu0 0.0
        %702 = vmatpush1.xpose.msra.mxu0 0.0
        %703 = vmatprep.subr.mxu0 0.0
        %704 = vmatpush1.xpose.msra.mxu0 0.0
        %705 = vmatprep.subr.mxu0 0.0
        %706 = vmatpush1.xpose.msra.mxu0 0.0
        %707 = vmatprep.subr.mxu0 0.0
        %708 = vmatpush1.xpose.msra.mxu0 0.0
        %709 = vmatprep.subr.mxu0 0.0
        %710 = vmatpush1.xpose.msra.mxu0 0.0
        %711 = vmatprep.subr.mxu0 0.0
        %712 = vmatpush1.xpose.msra.mxu0 0.0
        %713 = vmatprep.subr.mxu0 0.0
        %714 = vmatpush1.xpose.msra.mxu0 0.0
        %715 = vmatprep.subr.mxu0 0.0
        %716 = vmatpush1.xpose.msra.mxu0 0.0
        %717 = vmatprep.subr.mxu0 0.0
        %718 = vmatpush1.xpose.msra.mxu0 0.0
        %719 = vmatprep.subr.mxu0 0.0
        %720 = vmatpush1.xpose.msra.mxu0 0.0
        %721 = vmatprep.subr.mxu0 0.0
        %722 = vmatpush1.xpose.msra.mxu0 %v689
        %723 = vmatprep.subr.mxu0 0.0
        %724 = vmatpush2.xpose.msra.mxu0 0.0
        %725 = vmatprep.subr.mxu0 0.0
        %726 = vmatpush2.xpose.msra.mxu0 0.0
        %727 = vmatprep.subr.mxu0 0.0
        %728 = vmatpush2.xpose.msra.mxu0 0.0
        %729 = vmatprep.subr.mxu0 0.0
        %730 = vmatpush2.xpose.msra.mxu0 0.0
        %731 = vmatprep.subr.mxu0 0.0
        %732 = vmatpush2.xpose.msra.mxu0 0.0
        %733 = vmatprep.subr.mxu0 0.0
        %734 = vmatpush2.xpose.msra.mxu0 0.0
        %735 = vmatprep.subr.mxu0 0.0
        %736 = vmatpush2.xpose.msra.mxu0 0.0
        %737 = vmatprep.subr.mxu0 0.0
        %738 = vmatpush2.xpose.msra.mxu0 0.0
        %739 = vmatprep.subr.mxu0 0.0
        %740 = vmatpush2.xpose.msra.mxu0 0.0
        %741 = vmatprep.subr.mxu0 0.0
        %742 = vmatpush2.xpose.msra.mxu0 0.0
        %743 = vmatprep.subr.mxu0 0.0
        %744 = vmatpush2.xpose.msra.mxu0 0.0
        %745 = vmatprep.subr.mxu0 0.0
        %746 = vmatpush2.xpose.msra.mxu0 0.0
        %747 = vmatprep.subr.mxu0 0.0
        %748 = vmatpush2.xpose.msra.mxu0 0.0
        %749 = vmatprep.subr.mxu0 0.0
        %750 = vmatpush2.xpose.msra.mxu0 0.0
        %751 = vmatprep.subr.mxu0 0.0
        %752 = vmatpush2.xpose.msra.mxu0 0.0
        %753 = vmatprep.subr.mxu0 0.0
        %754 = vmatpush2.xpose.msra.mxu0 0.0
        %755 = vmatprep.mubr.f32.mxu0 0.0
        %756 = vmatmul.mubr.f32.gmra.mxu0 %v686
        %v757 = vpop.f32.mrf.mxu0
        %v758 = vadd.f32 0.0, %v757
        %v759 = vpop.f32.mrf.mxu0
        %760 = vdwg.mxu0
        %v761 = vlaneseq
        %v762 = vshrl.u32 %v761, 7
        %v763 = vstv 0
        %v764 = vadd.s32 %v763, %v762
        %v765 = vlaneseq
        %v766 = vand.u32 %v765, 127
        %v767 = vadd.s32 %v763, %v766
        %vm768 = vcmp.le.s32.totalorder %v767, %v764
        %v769 = vsel %vm768, %v758, -1e+30
        %v770 = vld [vmem:[#allocation7] sm:$0xff]
        %v771 = vsel %vm681, %v769, -inf
        %772 = vmax.xlane.f32.xlu0 %v771
        %v773 = vpop.xlane.xlu0 %772
        %v774 = vmax.f32 %v770, %v773
        %v775 = vsub.f32 %v770, %v774
        %v776 = vmul.f32 %v775, 1.442695
        %v777 = vpow.pop %v776
        %779 = vset.pattern.permute.xlu0 0
        %780 = vperm.xlu0 %779, %v774
        %v781 = vpop.permute.xlu0 %780
        %v783 = vsub.f32 %v769, %v781
        %v784 = vmul.f32 %v783, 1.442695
        %v785 = vpow.pop %v784
        %v786 = vld [vmem:[#allocation8] sm:$0xff]
        %v787 = vmul.f32 %v777, %v786
        %v788 = vsel %vm681, %v785, 0.0
        %789 = vadd.xlane.f32.xlu0 %v788
        %v790 = vpop.xlane.xlu0 %789
        %v791 = vadd.f32 %v787, %v790
        %792 = vst.msk [vmem:[#allocation8] sm:$0xff] %vm678, %v791
        %v793 = vld [vmem:[#allocation9] sm:$0xff]
        %795 = vset.pattern.permute.xlu0 0
        %796 = vperm.xlu0 %795, %v777
        %v797 = vpop.permute.xlu0 %796
        %v799 = vmul.f32 %v797, %v793
        %v801 = vsel %vm681, %v785, 0
        %803 = vmatprep.subr.mxu0 0.0
        %804 = vmatpush1.msra.mxu0 0.0
        %805 = vmatprep.subr.mxu0 0.0
        %806 = vmatpush1.msra.mxu0 0.0
        %807 = vmatprep.subr.mxu0 0.0
        %808 = vmatpush1.msra.mxu0 0.0
        %809 = vmatprep.subr.mxu0 0.0
        %810 = vmatpush1.msra.mxu0 0.0
        %811 = vmatprep.subr.mxu0 0.0
        %812 = vmatpush1.msra.mxu0 0.0
        %813 = vmatprep.subr.mxu0 0.0
        %814 = vmatpush1.msra.mxu0 0.0
        %815 = vmatprep.subr.mxu0 0.0
        %816 = vmatpush1.msra.mxu0 0.0
        %817 = vmatprep.subr.mxu0 0.0
        %818 = vmatpush1.msra.mxu0 0.0
        %819 = vmatprep.subr.mxu0 0.0
        %820 = vmatpush1.msra.mxu0 0.0
        %821 = vmatprep.subr.mxu0 0.0
        %822 = vmatpush1.msra.mxu0 0.0
        %823 = vmatprep.subr.mxu0 0.0
        %824 = vmatpush1.msra.mxu0 0.0
        %825 = vmatprep.subr.mxu0 0.0
        %826 = vmatpush1.msra.mxu0 0.0
        %827 = vmatprep.subr.mxu0 0.0
        %828 = vmatpush1.msra.mxu0 0.0
        %829 = vmatprep.subr.mxu0 0.0
        %830 = vmatpush1.msra.mxu0 0.0
        %831 = vmatprep.subr.mxu0 0.0
        %832 = vmatpush1.msra.mxu0 0.0
        %833 = vmatprep.subr.mxu0 0.0
        %834 = vmatpush1.msra.mxu0 %v684
        %835 = vmatprep.subr.mxu0 0.0
        %836 = vmatpush2.msra.mxu0 0.0
        %837 = vmatprep.subr.mxu0 0.0
        %838 = vmatpush2.msra.mxu0 0.0
        %839 = vmatprep.subr.mxu0 0.0
        %840 = vmatpush2.msra.mxu0 0.0
        %841 = vmatprep.subr.mxu0 0.0
        %842 = vmatpush2.msra.mxu0 0.0
        %843 = vmatprep.subr.mxu0 0.0
        %844 = vmatpush2.msra.mxu0 0.0
        %845 = vmatprep.subr.mxu0 0.0
        %846 = vmatpush2.msra.mxu0 0.0
        %847 = vmatprep.subr.mxu0 0.0
        %848 = vmatpush2.msra.mxu0 0.0
        %849 = vmatprep.subr.mxu0 0.0
        %850 = vmatpush2.msra.mxu0 0.0
        %851 = vmatprep.subr.mxu0 0.0
        %852 = vmatpush2.msra.mxu0 0.0
        %853 = vmatprep.subr.mxu0 0.0
        %854 = vmatpush2.msra.mxu0 0.0
        %855 = vmatprep.subr.mxu0 0.0
        %856 = vmatpush2.msra.mxu0 0.0
        %857 = vmatprep.subr.mxu0 0.0
        %858 = vmatpush2.msra.mxu0 0.0
        %859 = vmatprep.subr.mxu0 0.0
        %860 = vmatpush2.msra.mxu0 0.0
        %861 = vmatprep.subr.mxu0 0.0
        %862 = vmatpush2.msra.mxu0 0.0
        %863 = vmatprep.subr.mxu0 0.0
        %864 = vmatpush2.msra.mxu0 0.0
        %865 = vmatprep.subr.mxu0 0.0
        %866 = vmatpush2.msra.mxu0 0.0
        %867 = vmatprep.mubr.f32.mxu0 0.0
        %868 = vmatmul.mubr.f32.gmra.mxu0 %v801
        %v869 = vpop.f32.mrf.mxu0
        %v870 = vadd.f32 0.0, %v869
        %v871 = vpop.f32.mrf.mxu0
        %872 = vdwg.mxu0
        %v873 = vadd.f32 %v799, %v870
        %874 = vst.msk [vmem:[#allocation9] sm:$0xff] %vm681, %v873
        %875 = vst.msk [vmem:[#allocation7] sm:$0xff] %vm678, %v774
        %v876 = vld [vmem:[#allocation9] sm:$0xff]
        %v877 = vld [vmem:[#allocation8] sm:$0xff]
        %v878 = vrcp.pop %v877
        %880 = vset.pattern.permute.xlu0 0
        %881 = vperm.xlu0 %880, %v878
        %v882 = vpop.permute.xlu0 %881
        %v884 = vmul.f32 %v876, %v882
        %885 = vst.msk [vmem:[#allocation5] sm:$0xff] %vm681, %v884
        %v886 = vld [vmem:[#allocation2] sm:$0xff]
        %887 = vst.msk [vmem:[#allocation7] sm:$0xff] %vm678, -inf
        %888 = vst.msk [vmem:[#allocation8] sm:$0xff] %vm678, 0.0
        %889 = vst.msk [vmem:[#allocation9] sm:$0xff] %vm681, 0.0
        %v890 = vld [vmem:[#allocation3] sm:$0xff]
        %v891 = vld [vmem:[#allocation4] sm:$0xff]
        %893 = vrot.lane.b32.xlu0 %v886, 120
        %v894 = vpop.permute.xlu0 %893
        %896 = vrot.lane.b32.xlu0 %v890, 120
        %v897 = vpop.permute.xlu0 %896
        %v898 = vsel %vm681, %v894, 0
        %v900 = vsel %vm681, %v897, 0
        %902 = vmatprep.subr.mxu0 0.0
        %903 = vmatpush1.xpose.msra.mxu0 0.0
        %904 = vmatprep.subr.mxu0 0.0
        %905 = vmatpush1.xpose.msra.mxu0 0.0
        %906 = vmatprep.subr.mxu0 0.0
        %907 = vmatpush1.xpose.msra.mxu0 0.0
        %908 = vmatprep.subr.mxu0 0.0
        %909 = vmatpush1.xpose.msra.mxu0 0.0
        %910 = vmatprep.subr.mxu0 0.0
        %911 = vmatpush1.xpose.msra.mxu0 0.0
        %912 = vmatprep.subr.mxu0 0.0
        %913 = vmatpush1.xpose.msra.mxu0 0.0
        %914 = vmatprep.subr.mxu0 0.0
        %915 = vmatpush1.xpose.msra.mxu0 0.0
        %916 = vmatprep.subr.mxu0 0.0
        %917 = vmatpush1.xpose.msra.mxu0 0.0
        %918 = vmatprep.subr.mxu0 0.0
        %919 = vmatpush1.xpose.msra.mxu0 0.0
        %920 = vmatprep.subr.mxu0 0.0
        %921 = vmatpush1.xpose.msra.mxu0 0.0
        %922 = vmatprep.subr.mxu0 0.0
        %923 = vmatpush1.xpose.msra.mxu0 0.0
        %924 = vmatprep.subr.mxu0 0.0
        %925 = vmatpush1.xpose.msra.mxu0 0.0
        %926 = vmatprep.subr.mxu0 0.0
        %927 = vmatpush1.xpose.msra.mxu0 0.0
        %928 = vmatprep.subr.mxu0 0.0
        %929 = vmatpush1.xpose.msra.mxu0 0.0
        %930 = vmatprep.subr.mxu0 0.0
        %931 = vmatpush1.xpose.msra.mxu0 0.0
        %932 = vmatprep.subr.mxu0 0.0
        %933 = vmatpush1.xpose.msra.mxu0 %v900
        %934 = vmatprep.subr.mxu0 0.0
        %935 = vmatpush2.xpose.msra.mxu0 0.0
        %936 = vmatprep.subr.mxu0 0.0
        %937 = vmatpush2.xpose.msra.mxu0 0.0
        %938 = vmatprep.subr.mxu0 0.0
        %939 = vmatpush2.xpose.msra.mxu0 0.0
        %940 = vmatprep.subr.mxu0 0.0
        %941 = vmatpush2.xpose.msra.mxu0 0.0
        %942 = vmatprep.subr.mxu0 0.0
        %943 = vmatpush2.xpose.msra.mxu0 0.0
        %944 = vmatprep.subr.mxu0 0.0
        %945 = vmatpush2.xpose.msra.mxu0 0.0
        %946 = vmatprep.subr.mxu0 0.0
        %947 = vmatpush2.xpose.msra.mxu0 0.0
        %948 = vmatprep.subr.mxu0 0.0
        %949 = vmatpush2.xpose.msra.mxu0 0.0
        %950 = vmatprep.subr.mxu0 0.0
        %951 = vmatpush2.xpose.msra.mxu0 0.0
        %952 = vmatprep.subr.mxu0 0.0
        %953 = vmatpush2.xpose.msra.mxu0 0.0
        %954 = vmatprep.subr.mxu0 0.0
        %955 = vmatpush2.xpose.msra.mxu0 0.0
        %956 = vmatprep.subr.mxu0 0.0
        %957 = vmatpush2.xpose.msra.mxu0 0.0
        %958 = vmatprep.subr.mxu0 0.0
        %959 = vmatpush2.xpose.msra.mxu0 0.0
        %960 = vmatprep.subr.mxu0 0.0
        %961 = vmatpush2.xpose.msra.mxu0 0.0
        %962 = vmatprep.subr.mxu0 0.0
        %963 = vmatpush2.xpose.msra.mxu0 0.0
        %964 = vmatprep.subr.mxu0 0.0
        %965 = vmatpush2.xpose.msra.mxu0 0.0
        %966 = vmatprep.mubr.f32.mxu0 0.0
        %967 = vmatmul.mubr.f32.gmra.mxu0 %v898
        %v968 = vpop.f32.mrf.mxu0
        %v969 = vadd.f32 0.0, %v968
        %v970 = vpop.f32.mrf.mxu0
        %971 = vdwg.mxu0
        %v972 = vsel %vm768, %v969, -1e+30
        %v973 = vld [vmem:[#allocation7] sm:$0xff]
        %v974 = vsel %vm681, %v972, -inf
        %975 = vmax.xlane.f32.xlu0 %v974
        %v976 = vpop.xlane.xlu0 %975
        %v977 = vmax.f32 %v973, %v976
        %v978 = vsub.f32 %v973, %v977
        %v979 = vmul.f32 %v978, 1.442695
        %v980 = vpow.pop %v979
        %982 = vset.pattern.permute.xlu0 0
        %983 = vperm.xlu0 %982, %v977
        %v984 = vpop.permute.xlu0 %983
        %v986 = vsub.f32 %v972, %v984
        %v987 = vmul.f32 %v986, 1.442695
        %v988 = vpow.pop %v987
        %v989 = vld [vmem:[#allocation8] sm:$0xff]
        %v990 = vmul.f32 %v980, %v989
        %v991 = vsel %vm681, %v988, 0.0
        %992 = vadd.xlane.f32.xlu0 %v991
        %v993 = vpop.xlane.xlu0 %992
        %v994 = vadd.f32 %v990, %v993
        %995 = vst.msk [vmem:[#allocation8] sm:$0xff] %vm678, %v994
        %v996 = vld [vmem:[#allocation9] sm:$0xff]
        %998 = vset.pattern.permute.xlu0 0
        %999 = vperm.xlu0 %998, %v980
        %v1000 = vpop.permute.xlu0 %999
        %v1002 = vmul.f32 %v1000, %v996
        %1004 = vrot.lane.b32.xlu0 %v891, 120
        %v1005 = vpop.permute.xlu0 %1004
        %v1008 = vsel %vm681, %v988, 0
        %1010 = vmatprep.subr.mxu0 0.0
        %1011 = vmatpush1.msra.mxu0 0.0
        %1012 = vmatprep.subr.mxu0 0.0
        %1013 = vmatpush1.msra.mxu0 0.0
        %1014 = vmatprep.subr.mxu0 0.0
        %1015 = vmatpush1.msra.mxu0 0.0
        %1016 = vmatprep.subr.mxu0 0.0
        %1017 = vmatpush1.msra.mxu0 0.0
        %1018 = vmatprep.subr.mxu0 0.0
        %1019 = vmatpush1.msra.mxu0 0.0
        %1020 = vmatprep.subr.mxu0 0.0
        %1021 = vmatpush1.msra.mxu0 0.0
        %1022 = vmatprep.subr.mxu0 0.0
        %1023 = vmatpush1.msra.mxu0 0.0
        %1024 = vmatprep.subr.mxu0 0.0
        %1025 = vmatpush1.msra.mxu0 0.0
        %1026 = vmatprep.subr.mxu0 0.0
        %1027 = vmatpush1.msra.mxu0 0.0
        %1028 = vmatprep.subr.mxu0 0.0
        %1029 = vmatpush1.msra.mxu0 0.0
        %1030 = vmatprep.subr.mxu0 0.0
        %1031 = vmatpush1.msra.mxu0 0.0
        %1032 = vmatprep.subr.mxu0 0.0
        %1033 = vmatpush1.msra.mxu0 0.0
        %1034 = vmatprep.subr.mxu0 0.0
        %1035 = vmatpush1.msra.mxu0 0.0
        %1036 = vmatprep.subr.mxu0 0.0
        %1037 = vmatpush1.msra.mxu0 0.0
        %1038 = vmatprep.subr.mxu0 0.0
        %1039 = vmatpush1.msra.mxu0 0.0
        %1040 = vmatprep.subr.mxu0 0.0
        %1041 = vmatpush1.msra.mxu0 %v1005
        %1042 = vmatprep.subr.mxu0 0.0
        %1043 = vmatpush2.msra.mxu0 0.0
        %1044 = vmatprep.subr.mxu0 0.0
        %1045 = vmatpush2.msra.mxu0 0.0
        %1046 = vmatprep.subr.mxu0 0.0
        %1047 = vmatpush2.msra.mxu0 0.0
        %1048 = vmatprep.subr.mxu0 0.0
        %1049 = vmatpush2.msra.mxu0 0.0
        %1050 = vmatprep.subr.mxu0 0.0
        %1051 = vmatpush2.msra.mxu0 0.0
        %1052 = vmatprep.subr.mxu0 0.0
        %1053 = vmatpush2.msra.mxu0 0.0
        %1054 = vmatprep.subr.mxu0 0.0
        %1055 = vmatpush2.msra.mxu0 0.0
        %1056 = vmatprep.subr.mxu0 0.0
        %1057 = vmatpush2.msra.mxu0 0.0
        %1058 = vmatprep.subr.mxu0 0.0
        %1059 = vmatpush2.msra.mxu0 0.0
        %1060 = vmatprep.subr.mxu0 0.0
        %1061 = vmatpush2.msra.mxu0 0.0
        %1062 = vmatprep.subr.mxu0 0.0
        %1063 = vmatpush2.msra.mxu0 0.0
        %1064 = vmatprep.subr.mxu0 0.0
        %1065 = vmatpush2.msra.mxu0 0.0
        %1066 = vmatprep.subr.mxu0 0.0
        %1067 = vmatpush2.msra.mxu0 0.0
        %1068 = vmatprep.subr.mxu0 0.0
        %1069 = vmatpush2.msra.mxu0 0.0
        %1070 = vmatprep.subr.mxu0 0.0
        %1071 = vmatpush2.msra.mxu0 0.0
        %1072 = vmatprep.subr.mxu0 0.0
        %1073 = vmatpush2.msra.mxu0 0.0
        %1074 = vmatprep.mubr.f32.mxu0 0.0
        %1075 = vmatmul.mubr.f32.gmra.mxu0 %v1008
        %v1076 = vpop.f32.mrf.mxu0
        %v1077 = vadd.f32 0.0, %v1076
        %v1078 = vpop.f32.mrf.mxu0
        %1079 = vdwg.mxu0
        %v1080 = vadd.f32 %v1002, %v1077
        %1081 = vst.msk [vmem:[#allocation9] sm:$0xff] %vm681, %v1080
        %1082 = vst.msk [vmem:[#allocation7] sm:$0xff] %vm678, %v977
        %v1083 = vld [vmem:[#allocation9] sm:$0xff]
        %v1084 = vld [vmem:[#allocation8] sm:$0xff]
        %v1085 = vrcp.pop %v1084
        %1087 = vset.pattern.permute.xlu0 0
        %1088 = vperm.xlu0 %1087, %v1085
        %v1089 = vpop.permute.xlu0 %1088
        %v1091 = vmul.f32 %v1083, %v1089
        %1093 = vrot.lane.b32.xlu0 %v1091, 8
        %v1094 = vpop.permute.xlu0 %1093
        %vm1096 = vcmask 130112
        %1097 = vst.msk [vmem:[#allocation5] sm:$0xff] %vm1096, %v1094
        %v1098 = vld [vmem:[#allocation2] sm:$0xff]
        %1099 = vst.msk [vmem:[#allocation7] sm:$0xff] %vm678, -inf
        %1100 = vst.msk [vmem:[#allocation8] sm:$0xff] %vm678, 0.0
        %1101 = vst.msk [vmem:[#allocation9] sm:$0xff] %vm681, 0.0
        %v1102 = vld [vmem:[#allocation3] sm:$0xff]
        %v1103 = vld [vmem:[#allocation4] sm:$0xff]
        %1105 = vrot.lane.b32.xlu0 %v1098, 112
        %v1106 = vpop.permute.xlu0 %1105
        %1108 = vrot.lane.b32.xlu0 %v1102, 112
        %v1109 = vpop.permute.xlu0 %1108
        %v1110 = vsel %vm681, %v1106, 0
        %v1112 = vsel %vm681, %v1109, 0
        %1114 = vmatprep.subr.mxu0 0.0
        %1115 = vmatpush1.xpose.msra.mxu0 0.0
        %1116 = vmatprep.subr.mxu0 0.0
        %1117 = vmatpush1.xpose.msra.mxu0 0.0
        %1118 = vmatprep.subr.mxu0 0.0
        %1119 = vmatpush1.xpose.msra.mxu0 0.0
        %1120 = vmatprep.subr.mxu0 0.0
        %1121 = vmatpush1.xpose.msra.mxu0 0.0
        %1122 = vmatprep.subr.mxu0 0.0
        %1123 = vmatpush1.xpose.msra.mxu0 0.0
        %1124 = vmatprep.subr.mxu0 0.0
        %1125 = vmatpush1.xpose.msra.mxu0 0.0
        %1126 = vmatprep.subr.mxu0 0.0
        %1127 = vmatpush1.xpose.msra.mxu0 0.0
        %1128 = vmatprep.subr.mxu0 0.0
        %1129 = vmatpush1.xpose.msra.mxu0 0.0
        %1130 = vmatprep.subr.mxu0 0.0
        %1131 = vmatpush1.xpose.msra.mxu0 0.0
        %1132 = vmatprep.subr.mxu0 0.0
        %1133 = vmatpush1.xpose.msra.mxu0 0.0
        %1134 = vmatprep.subr.mxu0 0.0
        %1135 = vmatpush1.xpose.msra.mxu0 0.0
        %1136 = vmatprep.subr.mxu0 0.0
        %1137 = vmatpush1.xpose.msra.mxu0 0.0
        %1138 = vmatprep.subr.mxu0 0.0
        %1139 = vmatpush1.xpose.msra.mxu0 0.0
        %1140 = vmatprep.subr.mxu0 0.0
        %1141 = vmatpush1.xpose.msra.mxu0 0.0
        %1142 = vmatprep.subr.mxu0 0.0
        %1143 = vmatpush1.xpose.msra.mxu0 0.0
        %1144 = vmatprep.subr.mxu0 0.0
        %1145 = vmatpush1.xpose.msra.mxu0 %v1112
        %1146 = vmatprep.subr.mxu0 0.0
        %1147 = vmatpush2.xpose.msra.mxu0 0.0
        %1148 = vmatprep.subr.mxu0 0.0
        %1149 = vmatpush2.xpose.msra.mxu0 0.0
        %1150 = vmatprep.subr.mxu0 0.0
        %1151 = vmatpush2.xpose.msra.mxu0 0.0
        %1152 = vmatprep.subr.mxu0 0.0
        %1153 = vmatpush2.xpose.msra.mxu0 0.0
        %1154 = vmatprep.subr.mxu0 0.0
        %1155 = vmatpush2.xpose.msra.mxu0 0.0
        %1156 = vmatprep.subr.mxu0 0.0
        %1157 = vmatpush2.xpose.msra.mxu0 0.0
        %1158 = vmatprep.subr.mxu0 0.0
        %1159 = vmatpush2.xpose.msra.mxu0 0.0
        %1160 = vmatprep.subr.mxu0 0.0
        %1161 = vmatpush2.xpose.msra.mxu0 0.0
        %1162 = vmatprep.subr.mxu0 0.0
        %1163 = vmatpush2.xpose.msra.mxu0 0.0
        %1164 = vmatprep.subr.mxu0 0.0
        %1165 = vmatpush2.xpose.msra.mxu0 0.0
        %1166 = vmatprep.subr.mxu0 0.0
        %1167 = vmatpush2.xpose.msra.mxu0 0.0
        %1168 = vmatprep.subr.mxu0 0.0
        %1169 = vmatpush2.xpose.msra.mxu0 0.0
        %1170 = vmatprep.subr.mxu0 0.0
        %1171 = vmatpush2.xpose.msra.mxu0 0.0
        %1172 = vmatprep.subr.mxu0 0.0
        %1173 = vmatpush2.xpose.msra.mxu0 0.0
        %1174 = vmatprep.subr.mxu0 0.0
        %1175 = vmatpush2.xpose.msra.mxu0 0.0
        %1176 = vmatprep.subr.mxu0 0.0
        %1177 = vmatpush2.xpose.msra.mxu0 0.0
        %1178 = vmatprep.mubr.f32.mxu0 0.0
        %1179 = vmatmul.mubr.f32.gmra.mxu0 %v1110
        %v1180 = vpop.f32.mrf.mxu0
        %v1181 = vadd.f32 0.0, %v1180
        %v1182 = vpop.f32.mrf.mxu0
        %1183 = vdwg.mxu0
        %v1184 = vsel %vm768, %v1181, -1e+30
        %v1185 = vld [vmem:[#allocation7] sm:$0xff]
        %v1186 = vsel %vm681, %v1184, -inf
        %1187 = vmax.xlane.f32.xlu0 %v1186
        %v1188 = vpop.xlane.xlu0 %1187
        %v1189 = vmax.f32 %v1185, %v1188
        %v1190 = vsub.f32 %v1185, %v1189
        %v1191 = vmul.f32 %v1190, 1.442695
        %v1192 = vpow.pop %v1191
        %1194 = vset.pattern.permute.xlu0 0
        %1195 = vperm.xlu0 %1194, %v1189
        %v1196 = vpop.permute.xlu0 %1195
        %v1198 = vsub.f32 %v1184, %v1196
        %v1199 = vmul.f32 %v1198, 1.442695
        %v1200 = vpow.pop %v1199
        %v1201 = vld [vmem:[#allocation8] sm:$0xff]
        %v1202 = vmul.f32 %v1192, %v1201
        %v1203 = vsel %vm681, %v1200, 0.0
        %1204 = vadd.xlane.f32.xlu0 %v1203
        %v1205 = vpop.xlane.xlu0 %1204
        %v1206 = vadd.f32 %v1202, %v1205
        %1207 = vst.msk [vmem:[#allocation8] sm:$0xff] %vm678, %v1206
        %v1208 = vld [vmem:[#allocation9] sm:$0xff]
        %1210 = vset.pattern.permute.xlu0 0
        %1211 = vperm.xlu0 %1210, %v1192
        %v1212 = vpop.permute.xlu0 %1211
        %v1214 = vmul.f32 %v1212, %v1208
        %1216 = vrot.lane.b32.xlu0 %v1103, 112
        %v1217 = vpop.permute.xlu0 %1216
        %v1220 = vsel %vm681, %v1200, 0
        %1222 = vmatprep.subr.mxu0 0.0
        %1223 = vmatpush1.msra.mxu0 0.0
        %1224 = vmatprep.subr.mxu0 0.0
        %1225 = vmatpush1.msra.mxu0 0.0
        %1226 = vmatprep.subr.mxu0 0.0
        %1227 = vmatpush1.msra.mxu0 0.0
        %1228 = vmatprep.subr.mxu0 0.0
        %1229 = vmatpush1.msra.mxu0 0.0
        %1230 = vmatprep.subr.mxu0 0.0
        %1231 = vmatpush1.msra.mxu0 0.0
        %1232 = vmatprep.subr.mxu0 0.0
        %1233 = vmatpush1.msra.mxu0 0.0
        %1234 = vmatprep.subr.mxu0 0.0
        %1235 = vmatpush1.msra.mxu0 0.0
        %1236 = vmatprep.subr.mxu0 0.0
        %1237 = vmatpush1.msra.mxu0 0.0
        %1238 = vmatprep.subr.mxu0 0.0
        %1239 = vmatpush1.msra.mxu0 0.0
        %1240 = vmatprep.subr.mxu0 0.0
        %1241 = vmatpush1.msra.mxu0 0.0
        %1242 = vmatprep.subr.mxu0 0.0
        %1243 = vmatpush1.msra.mxu0 0.0
        %1244 = vmatprep.subr.mxu0 0.0
        %1245 = vmatpush1.msra.mxu0 0.0
        %1246 = vmatprep.subr.mxu0 0.0
        %1247 = vmatpush1.msra.mxu0 0.0
        %1248 = vmatprep.subr.mxu0 0.0
        %1249 = vmatpush1.msra.mxu0 0.0
        %1250 = vmatprep.subr.mxu0 0.0
        %1251 = vmatpush1.msra.mxu0 0.0
        %1252 = vmatprep.subr.mxu0 0.0
        %1253 = vmatpush1.msra.mxu0 %v1217
        %1254 = vmatprep.subr.mxu0 0.0
        %1255 = vmatpush2.msra.mxu0 0.0
        %1256 = vmatprep.subr.mxu0 0.0
        %1257 = vmatpush2.msra.mxu0 0.0
        %1258 = vmatprep.subr.mxu0 0.0
        %1259 = vmatpush2.msra.mxu0 0.0
        %1260 = vmatprep.subr.mxu0 0.0
        %1261 = vmatpush2.msra.mxu0 0.0
        %1262 = vmatprep.subr.mxu0 0.0
        %1263 = vmatpush2.msra.mxu0 0.0
        %1264 = vmatprep.subr.mxu0 0.0
        %1265 = vmatpush2.msra.mxu0 0.0
        %1266 = vmatprep.subr.mxu0 0.0
        %1267 = vmatpush2.msra.mxu0 0.0
        %1268 = vmatprep.subr.mxu0 0.0
        %1269 = vmatpush2.msra.mxu0 0.0
        %1270 = vmatprep.subr.mxu0 0.0
        %1271 = vmatpush2.msra.mxu0 0.0
        %1272 = vmatprep.subr.mxu0 0.0
        %1273 = vmatpush2.msra.mxu0 0.0
        %1274 = vmatprep.subr.mxu0 0.0
        %1275 = vmatpush2.msra.mxu0 0.0
        %1276 = vmatprep.subr.mxu0 0.0
        %1277 = vmatpush2.msra.mxu0 0.0
        %1278 = vmatprep.subr.mxu0 0.0
        %1279 = vmatpush2.msra.mxu0 0.0
        %1280 = vmatprep.subr.mxu0 0.0
        %1281 = vmatpush2.msra.mxu0 0.0
        %1282 = vmatprep.subr.mxu0 0.0
        %1283 = vmatpush2.msra.mxu0 0.0
        %1284 = vmatprep.subr.mxu0 0.0
        %1285 = vmatpush2.msra.mxu0 0.0
        %1286 = vmatprep.mubr.f32.mxu0 0.0
        %1287 = vmatmul.mubr.f32.gmra.mxu0 %v1220
        %v1288 = vpop.f32.mrf.mxu0
        %v1289 = vadd.f32 0.0, %v1288
        %v1290 = vpop.f32.mrf.mxu0
        %1291 = vdwg.mxu0
        %v1292 = vadd.f32 %v1214, %v1289
        %1293 = vst.msk [vmem:[#allocation9] sm:$0xff] %vm681, %v1292
        %1294 = vst.msk [vmem:[#allocation7] sm:$0xff] %vm678, %v1189
        %v1295 = vld [vmem:[#allocation9] sm:$0xff]
        %v1296 = vld [vmem:[#allocation8] sm:$0xff]
        %v1297 = vrcp.pop %v1296
        %1299 = vset.pattern.permute.xlu0 0
        %1300 = vperm.xlu0 %1299, %v1297
        %v1301 = vpop.permute.xlu0 %1300
        %v1303 = vmul.f32 %v1295, %v1301
        %1305 = vrot.lane.b32.xlu0 %v1303, 16
        %v1306 = vpop.permute.xlu0 %1305
        %vm1308 = vcmask 195712
        %1309 = vst.msk [vmem:[#allocation5] sm:$0xff] %vm1308, %v1306
        %v1310 = vld [vmem:[#allocation2] sm:$0xff]
        %1311 = vst.msk [vmem:[#allocation7] sm:$0xff] %vm678, -inf
        %1312 = vst.msk [vmem:[#allocation8] sm:$0xff] %vm678, 0.0
        %1313 = vst.msk [vmem:[#allocation9] sm:$0xff] %vm681, 0.0
        %v1314 = vld [vmem:[#allocation3] sm:$0xff]
        %v1315 = vld [vmem:[#allocation4] sm:$0xff]
        %1317 = vrot.lane.b32.xlu0 %v1310, 104
        %v1318 = vpop.permute.xlu0 %1317
        %1320 = vrot.lane.b32.xlu0 %v1314, 104
        %v1321 = vpop.permute.xlu0 %1320
        %v1322 = vsel %vm681, %v1318, 0
        %v1324 = vsel %vm681, %v1321, 0
        %1326 = vmatprep.subr.mxu0 0.0
        %1327 = vmatpush1.xpose.msra.mxu0 0.0
        %1328 = vmatprep.subr.mxu0 0.0
        %1329 = vmatpush1.xpose.msra.mxu0 0.0
        %1330 = vmatprep.subr.mxu0 0.0
        %1331 = vmatpush1.xpose.msra.mxu0 0.0
        %1332 = vmatprep.subr.mxu0 0.0
        %1333 = vmatpush1.xpose.msra.mxu0 0.0
        %1334 = vmatprep.subr.mxu0 0.0
        %1335 = vmatpush1.xpose.msra.mxu0 0.0
        %1336 = vmatprep.subr.mxu0 0.0
        %1337 = vmatpush1.xpose.msra.mxu0 0.0
        %1338 = vmatprep.subr.mxu0 0.0
        %1339 = vmatpush1.xpose.msra.mxu0 0.0
        %1340 = vmatprep.subr.mxu0 0.0
        %1341 = vmatpush1.xpose.msra.mxu0 0.0
        %1342 = vmatprep.subr.mxu0 0.0
        %1343 = vmatpush1.xpose.msra.mxu0 0.0
        %1344 = vmatprep.subr.mxu0 0.0
        %1345 = vmatpush1.xpose.msra.mxu0 0.0
        %1346 = vmatprep.subr.mxu0 0.0
        %1347 = vmatpush1.xpose.msra.mxu0 0.0
        %1348 = vmatprep.subr.mxu0 0.0
        %1349 = vmatpush1.xpose.msra.mxu0 0.0
        %1350 = vmatprep.subr.mxu0 0.0
        %1351 = vmatpush1.xpose.msra.mxu0 0.0
        %1352 = vmatprep.subr.mxu0 0.0
        %1353 = vmatpush1.xpose.msra.mxu0 0.0
        %1354 = vmatprep.subr.mxu0 0.0
        %1355 = vmatpush1.xpose.msra.mxu0 0.0
        %1356 = vmatprep.subr.mxu0 0.0
        %1357 = vmatpush1.xpose.msra.mxu0 %v1324
        %1358 = vmatprep.subr.mxu0 0.0
        %1359 = vmatpush2.xpose.msra.mxu0 0.0
        %1360 = vmatprep.subr.mxu0 0.0
        %1361 = vmatpush2.xpose.msra.mxu0 0.0
        %1362 = vmatprep.subr.mxu0 0.0
        %1363 = vmatpush2.xpose.msra.mxu0 0.0
        %1364 = vmatprep.subr.mxu0 0.0
        %1365 = vmatpush2.xpose.msra.mxu0 0.0
        %1366 = vmatprep.subr.mxu0 0.0
        %1367 = vmatpush2.xpose.msra.mxu0 0.0
        %1368 = vmatprep.subr.mxu0 0.0
        %1369 = vmatpush2.xpose.msra.mxu0 0.0
        %1370 = vmatprep.subr.mxu0 0.0
        %1371 = vmatpush2.xpose.msra.mxu0 0.0
        %1372 = vmatprep.subr.mxu0 0.0
        %1373 = vmatpush2.xpose.msra.mxu0 0.0
        %1374 = vmatprep.subr.mxu0 0.0
        %1375 = vmatpush2.xpose.msra.mxu0 0.0
        %1376 = vmatprep.subr.mxu0 0.0
        %1377 = vmatpush2.xpose.msra.mxu0 0.0
        %1378 = vmatprep.subr.mxu0 0.0
        %1379 = vmatpush2.xpose.msra.mxu0 0.0
        %1380 = vmatprep.subr.mxu0 0.0
        %1381 = vmatpush2.xpose.msra.mxu0 0.0
        %1382 = vmatprep.subr.mxu0 0.0
        %1383 = vmatpush2.xpose.msra.mxu0 0.0
        %1384 = vmatprep.subr.mxu0 0.0
        %1385 = vmatpush2.xpose.msra.mxu0 0.0
        %1386 = vmatprep.subr.mxu0 0.0
        %1387 = vmatpush2.xpose.msra.mxu0 0.0
        %1388 = vmatprep.subr.mxu0 0.0
        %1389 = vmatpush2.xpose.msra.mxu0 0.0
        %1390 = vmatprep.mubr.f32.mxu0 0.0
        %1391 = vmatmul.mubr.f32.gmra.mxu0 %v1322
        %v1392 = vpop.f32.mrf.mxu0
        %v1393 = vadd.f32 0.0, %v1392
        %v1394 = vpop.f32.mrf.mxu0
        %1395 = vdwg.mxu0
        %v1396 = vsel %vm768, %v1393, -1e+30
        %v1397 = vld [vmem:[#allocation7] sm:$0xff]
        %v1398 = vsel %vm681, %v1396, -inf
        %1399 = vmax.xlane.f32.xlu0 %v1398
        %v1400 = vpop.xlane.xlu0 %1399
        %v1401 = vmax.f32 %v1397, %v1400
        %v1402 = vsub.f32 %v1397, %v1401
        %v1403 = vmul.f32 %v1402, 1.442695
        %v1404 = vpow.pop %v1403
        %1406 = vset.pattern.permute.xlu0 0
        %1407 = vperm.xlu0 %1406, %v1401
        %v1408 = vpop.permute.xlu0 %1407
        %v1410 = vsub.f32 %v1396, %v1408
        %v1411 = vmul.f32 %v1410, 1.442695
        %v1412 = vpow.pop %v1411
        %v1413 = vld [vmem:[#allocation8] sm:$0xff]
        %v1414 = vmul.f32 %v1404, %v1413
        %v1415 = vsel %vm681, %v1412, 0.0
        %1416 = vadd.xlane.f32.xlu0 %v1415
        %v1417 = vpop.xlane.xlu0 %1416
        %v1418 = vadd.f32 %v1414, %v1417
        %1419 = vst.msk [vmem:[#allocation8] sm:$0xff] %vm678, %v1418
        %v1420 = vld [vmem:[#allocation9] sm:$0xff]
        %1422 = vset.pattern.permute.xlu0 0
        %1423 = vperm.xlu0 %1422, %v1404
        %v1424 = vpop.permute.xlu0 %1423
        %v1426 = vmul.f32 %v1424, %v1420
        %1428 = vrot.lane.b32.xlu0 %v1315, 104
        %v1429 = vpop.permute.xlu0 %1428
        %v1432 = vsel %vm681, %v1412, 0
        %1434 = vmatprep.subr.mxu0 0.0
        %1435 = vmatpush1.msra.mxu0 0.0
        %1436 = vmatprep.subr.mxu0 0.0
        %1437 = vmatpush1.msra.mxu0 0.0
        %1438 = vmatprep.subr.mxu0 0.0
        %1439 = vmatpush1.msra.mxu0 0.0
        %1440 = vmatprep.subr.mxu0 0.0
        %1441 = vmatpush1.msra.mxu0 0.0
        %1442 = vmatprep.subr.mxu0 0.0
        %1443 = vmatpush1.msra.mxu0 0.0
        %1444 = vmatprep.subr.mxu0 0.0
        %1445 = vmatpush1.msra.mxu0 0.0
        %1446 = vmatprep.subr.mxu0 0.0
        %1447 = vmatpush1.msra.mxu0 0.0
        %1448 = vmatprep.subr.mxu0 0.0
        %1449 = vmatpush1.msra.mxu0 0.0
        %1450 = vmatprep.subr.mxu0 0.0
        %1451 = vmatpush1.msra.mxu0 0.0
        %1452 = vmatprep.subr.mxu0 0.0
        %1453 = vmatpush1.msra.mxu0 0.0
        %1454 = vmatprep.subr.mxu0 0.0
        %1455 = vmatpush1.msra.mxu0 0.0
        %1456 = vmatprep.subr.mxu0 0.0
        %1457 = vmatpush1.msra.mxu0 0.0
        %1458 = vmatprep.subr.mxu0 0.0
        %1459 = vmatpush1.msra.mxu0 0.0
        %1460 = vmatprep.subr.mxu0 0.0
        %1461 = vmatpush1.msra.mxu0 0.0
        %1462 = vmatprep.subr.mxu0 0.0
        %1463 = vmatpush1.msra.mxu0 0.0
        %1464 = vmatprep.subr.mxu0 0.0
        %1465 = vmatpush1.msra.mxu0 %v1429
        %1466 = vmatprep.subr.mxu0 0.0
        %1467 = vmatpush2.msra.mxu0 0.0
        %1468 = vmatprep.subr.mxu0 0.0
        %1469 = vmatpush2.msra.mxu0 0.0
        %1470 = vmatprep.subr.mxu0 0.0
        %1471 = vmatpush2.msra.mxu0 0.0
        %1472 = vmatprep.subr.mxu0 0.0
        %1473 = vmatpush2.msra.mxu0 0.0
        %1474 = vmatprep.subr.mxu0 0.0
        %1475 = vmatpush2.msra.mxu0 0.0
        %1476 = vmatprep.subr.mxu0 0.0
        %1477 = vmatpush2.msra.mxu0 0.0
        %1478 = vmatprep.subr.mxu0 0.0
        %1479 = vmatpush2.msra.mxu0 0.0
        %1480 = vmatprep.subr.mxu0 0.0
        %1481 = vmatpush2.msra.mxu0 0.0
        %1482 = vmatprep.subr.mxu0 0.0
        %1483 = vmatpush2.msra.mxu0 0.0
        %1484 = vmatprep.subr.mxu0 0.0
        %1485 = vmatpush2.msra.mxu0 0.0
        %1486 = vmatprep.subr.mxu0 0.0
        %1487 = vmatpush2.msra.mxu0 0.0
        %1488 = vmatprep.subr.mxu0 0.0
        %1489 = vmatpush2.msra.mxu0 0.0
        %1490 = vmatprep.subr.mxu0 0.0
        %1491 = vmatpush2.msra.mxu0 0.0
        %1492 = vmatprep.subr.mxu0 0.0
        %1493 = vmatpush2.msra.mxu0 0.0
        %1494 = vmatprep.subr.mxu0 0.0
        %1495 = vmatpush2.msra.mxu0 0.0
        %1496 = vmatprep.subr.mxu0 0.0
        %1497 = vmatpush2.msra.mxu0 0.0
        %1498 = vmatprep.mubr.f32.mxu0 0.0
        %1499 = vmatmul.mubr.f32.gmra.mxu0 %v1432
        %v1500 = vpop.f32.mrf.mxu0
        %v1501 = vadd.f32 0.0, %v1500
        %v1502 = vpop.f32.mrf.mxu0
        %1503 = vdwg.mxu0
        %v1504 = vadd.f32 %v1426, %v1501
        %1505 = vst.msk [vmem:[#allocation9] sm:$0xff] %vm681, %v1504
        %1506 = vst.msk [vmem:[#allocation7] sm:$0xff] %vm678, %v1401
        %v1507 = vld [vmem:[#allocation9] sm:$0xff]
        %v1508 = vld [vmem:[#allocation8] sm:$0xff]
        %v1509 = vrcp.pop %v1508
        %1511 = vset.pattern.permute.xlu0 0
        %1512 = vperm.xlu0 %1511, %v1509
        %v1513 = vpop.permute.xlu0 %1512
        %v1515 = vmul.f32 %v1507, %v1513
        %1517 = vrot.lane.b32.xlu0 %v1515, 24
        %v1518 = vpop.permute.xlu0 %1517
        %vm1520 = vcmask 261312
        %1521 = vst.msk [vmem:[#allocation5] sm:$0xff] %vm1520, %v1518
        %s1522 = scalar_lea.vmem [#allocation18], %s419
        %v1523 = vld [vmem:[%s1522] sm:$0xff]
        %v1524 = vld [vmem:[%s1522 + $0x8] sm:$0xff]
        %v1525 = vld [vmem:[%s1522 + $0x10] sm:$0xff]
        %v1526 = vld [vmem:[%s1522 + $0x18] sm:$0xff]
        %p1527 = scmp.eq.s32.totalorder %s33, 0
        // Predicated region
        $region77: #{tpu_custom_call.1} parent=55 // pred_check
          %p1528 = pneg %p1527
        $region78: #{tpu_custom_call.1} parent=55 // pred_check_branch
          %1530 = sbr.rel (%p1528) target = $region80
        $region79: #{tpu_custom_call.1} parent=55 // pred_region
          %v1531 = vld [vmem:[#allocation5] sm:$0xff]
          %v1533 = vsel %vm433, %v1531, 0
          %1535 = vmatprep.subr.mxu0 0.0
          %1536 = vmatpush1.msra.mxu0 0.0
          %1537 = vmatprep.subr.mxu0 0.0
          %1538 = vmatpush1.msra.mxu0 0.0
          %1539 = vmatprep.subr.mxu0 0.0
          %1540 = vmatpush1.msra.mxu0 0.0
          %1541 = vmatprep.subr.mxu0 0.0
          %1542 = vmatpush1.msra.mxu0 0.0
          %1543 = vmatprep.subr.mxu0 0.0
          %1544 = vmatpush1.msra.mxu0 0.0
          %1545 = vmatprep.subr.mxu0 0.0
          %1546 = vmatpush1.msra.mxu0 0.0
          %1547 = vmatprep.subr.mxu0 0.0
          %1548 = vmatpush1.msra.mxu0 0.0
          %1549 = vmatprep.subr.mxu0 0.0
          %1550 = vmatpush1.msra.mxu0 0.0
          %1551 = vmatprep.subr.mxu0 0.0
          %1552 = vmatpush1.msra.mxu0 0.0
          %1553 = vmatprep.subr.mxu0 0.0
          %1554 = vmatpush1.msra.mxu0 0.0
          %1555 = vmatprep.subr.mxu0 0.0
          %1556 = vmatpush1.msra.mxu0 0.0
          %1557 = vmatprep.subr.mxu0 0.0
          %1558 = vmatpush1.msra.mxu0 0.0
          %1559 = vmatprep.subr.mxu0 0.0
          %1560 = vmatpush1.msra.mxu0 %v1526
          %1561 = vmatprep.subr.mxu0 0.0
          %1562 = vmatpush1.msra.mxu0 %v1525
          %1563 = vmatprep.subr.mxu0 0.0
          %1564 = vmatpush1.msra.mxu0 %v1524
          %1565 = vmatprep.subr.mxu0 0.0
          %1566 = vmatpush1.msra.mxu0 %v1523
          %1567 = vmatprep.subr.mxu0 0.0
          %1568 = vmatpush2.msra.mxu0 0.0
          %1569 = vmatprep.subr.mxu0 0.0
          %1570 = vmatpush2.msra.mxu0 0.0
          %1571 = vmatprep.subr.mxu0 0.0
          %1572 = vmatpush2.msra.mxu0 0.0
          %1573 = vmatprep.subr.mxu0 0.0
          %1574 = vmatpush2.msra.mxu0 0.0
          %1575 = vmatprep.subr.mxu0 0.0
          %1576 = vmatpush2.msra.mxu0 0.0
          %1577 = vmatprep.subr.mxu0 0.0
          %1578 = vmatpush2.msra.mxu0 0.0
          %1579 = vmatprep.subr.mxu0 0.0
          %1580 = vmatpush2.msra.mxu0 0.0
          %1581 = vmatprep.subr.mxu0 0.0
          %1582 = vmatpush2.msra.mxu0 0.0
          %1583 = vmatprep.subr.mxu0 0.0
          %1584 = vmatpush2.msra.mxu0 0.0
          %1585 = vmatprep.subr.mxu0 0.0
          %1586 = vmatpush2.msra.mxu0 0.0
          %1587 = vmatprep.subr.mxu0 0.0
          %1588 = vmatpush2.msra.mxu0 0.0
          %1589 = vmatprep.subr.mxu0 0.0
          %1590 = vmatpush2.msra.mxu0 0.0
          %1591 = vmatprep.subr.mxu0 0.0
          %1592 = vmatpush2.msra.mxu0 0.0
          %1593 = vmatprep.subr.mxu0 0.0
          %1594 = vmatpush2.msra.mxu0 0.0
          %1595 = vmatprep.subr.mxu0 0.0
          %1596 = vmatpush2.msra.mxu0 0.0
          %1597 = vmatprep.subr.mxu0 0.0
          %1598 = vmatpush2.msra.mxu0 0.0
          %1599 = vmatprep.mubr.f32.mxu0 0.0
          %1600 = vmatmul.mubr.f32.gmra.mxu0 %v1533
          %v1601 = vpop.f32.mrf.mxu0
          %v1602 = vadd.f32 0.0, %v1601
          %v1603 = vpop.f32.mrf.mxu0
          %1604 = vdwg.mxu0
          %1605 = vst.msk [vmem:[#allocation6] sm:$0xff] %vm433, %v1602
          %v1606 = vld [vmem:[#allocation6] sm:$0xff]
          %v1607 = vld [vmem:[%s8] sm:$0x1]
          %v1609 = vlaneseq
          %v1610 = vshrl.u32 %v1609, 7
          %v1611 = vsub.s32 0, %v1610
          %v1612 = vrot.slane %v1607, %v1611
          %v1614 = vadd.f32 %v1606, %v1612
          %1615 = vst.msk [vmem:[%s417] sm:$0xff] %vm433, %v1614
        $region80: #{tpu_custom_call.1} parent=55 // pred_fallthru
          _
        %s1616 = sand.u32 %s242, 1
        %s1617 = scalar_lea.sflag [#allocation12], %s1616
        %s1618 = sand.u32 %s242, 1
        %s1619 = smul.addr %s1618, 8
        %s1620 = scalar_lea.vmem [#allocation19], %s1619
        // Predicated region
        $region81: #{tpu_custom_call.1} parent=55 // pred_check
          %p1621 = pneg %p252
        $region82: #{tpu_custom_call.1} parent=55 // pred_check_branch
          %1623 = sbr.rel (%p1621) target = $region84
        $region83: #{tpu_custom_call.1} parent=55 // pred_region
          %s1625 = ssub.s32 128, 128
          %1626 = vsyncadd %s1617, %s1625
          %s1627 = smul.addr %s32, 128
          %s1628 = scalar_lea.hbm %s9, %s1627
          %s1630 = sshll.u32 %s1620, 4
          %s1631 = int_to_ptr.vmem [resolvable:$true] %s1630
          %1633 = dma.vmem_to_hbm [thread:$0]  %s1631, 128, %s1628, %s1617
        $region84: #{tpu_custom_call.1} parent=55 // pred_fallthru
          _
      $region56: #{tpu_custom_call.1} parent=5 // pred_fallthru
        _
      %p1634 = scmp.le.s32.totalorder 2, %s23
      // Predicated region
      $region85: #{tpu_custom_call.1} parent=5 // pred_check
        %p1635 = pneg %p1634
      $region86: #{tpu_custom_call.1} parent=5 // pred_check_branch
        %1637 = sbr.rel (%p1635) target = $region88
      $region87: #{tpu_custom_call.1} parent=5 // pred_region
        %s1638 = ssub.s32 %s23, 2
        // Predicated region
        $region89: #{tpu_custom_call.1} parent=87 // pred_check
          %p1639 = pneg %p258
        $region90: #{tpu_custom_call.1} parent=87 // pred_check_branch
          %1641 = sbr.rel (%p1639) target = $region92
        $region91: #{tpu_custom_call.1} parent=87 // pred_region
          %s1642 = sand.u32 %s243, 1
          %s1643 = scalar_lea.sflag [#allocation12], %s1642
          %s1644 = sand.u32 %s243, 1
          %s1645 = smul.addr %s1644, 8
          %s1646 = scalar_lea.vmem [#allocation19], %s1645
          %1647 = dma.done %s1643, 128
        $region92: #{tpu_custom_call.1} parent=87 // pred_fallthru
          _
      $region88: #{tpu_custom_call.1} parent=5 // pred_fallthru
        _
    $region6: #{tpu_custom_call.1} parent=1 // loop_footer
      %s27 = sadd.s32 1, %s23
    $region7: #{tpu_custom_call.1} parent=1 // loop_footer_branch
      %22 = sbr.rel target = $region3
    $region8: #{tpu_custom_call.1} parent=1 // loop_exit
      _
    %1648 = vsyncpa [#allocation11], 1
    %s1649 = scalar_lea.sflag [#allocation11], 1
    %1650 = vsyncpa %s1649, 1
    %1651 = vsyncpa [#allocation14], 1
    %1652 = vsyncpa [#allocation17], 1
    %1653 = vsyncpa [#allocation12], 1
    %s1654 = scalar_lea.sflag [#allocation12], 1
    %1655 = vsyncpa %s1654, 1

</llo_original>
